<compile_context>
chip_gen: v5e
topology: v5e:2x2
jax: 0.10.0
libtpu: 0.0.40
codegen_flags: <defaults>
</compile_context>

<pallas_src>
import jax
import jax.numpy as jnp
from jax.experimental import pallas as pl
from jax.experimental.pallas import tpu as pltpu

_LANE = 128
_SUBLANE = 8


def _round_up(x, m):
    return ((x + m - 1) // m) * m


def lstm_fc_kernel(x_ref, w_ih_ref, b_ref, w_hh_ref, fc_w_ref, fc_b_ref,
                   out_ref, xproj_scr):
    """Whole LSTM forward + final Linear in one invocation.

    PyTorch gate order (i, f, g, o):
      i = sigmoid(.)  f = sigmoid(.)  g = tanh(.)  o = sigmoid(.)
      c' = f*c + i*g ; h' = o*tanh(c')
    """
    Bp = out_ref.shape[0]
    Hp = w_hh_ref.shape[0]
    S = x_ref.shape[0] // Bp

    # One-shot, lane-dense input projection for every timestep with the
    # combined bias folded in:  (S*Bp, Ip) @ (Ip, 4*Hp) + b  -> VMEM scratch.
    xproj_scr[...] = (
        jnp.dot(x_ref[...], w_ih_ref[...], preferred_element_type=jnp.float32)
        + b_ref[...])

    def step(t, carry):
        h, c = carry
        # Rows [t*Bp, (t+1)*Bp) of the precomputed projection (sublane-aligned).
        gates = (xproj_scr[pl.ds(t * Bp, Bp), :]
                 + jnp.dot(h, w_hh_ref[...],
                           preferred_element_type=jnp.float32))   # (Bp, 4*Hp)
        i = jax.nn.sigmoid(gates[:, 0 * Hp:1 * Hp])
        f = jax.nn.sigmoid(gates[:, 1 * Hp:2 * Hp])
        g = jnp.tanh(gates[:, 2 * Hp:3 * Hp])
        o = jax.nn.sigmoid(gates[:, 3 * Hp:4 * Hp])
        c = f * c + i * g
        h = o * jnp.tanh(c)
        return (h, c)

    h0 = jnp.zeros((Bp, Hp), jnp.float32)
    c0 = jnp.zeros((Bp, Hp), jnp.float32)
    hT, _ = jax.lax.fori_loop(0, S, step, (h0, c0), unroll=True)

    # Fused final Linear: fc(h_n[-1]).
    out_ref[...] = (jnp.dot(hT, fc_w_ref[...],
                            preferred_element_type=jnp.float32)
                    + fc_b_ref[...]).astype(out_ref.dtype)


def lstm_model_forward(x_bsi, params):
    """x_bsi: (batch, seq, input_size) f32 (PyTorch batch_first layout)."""
    w_ih, w_hh, b, fc_w, fc_b = params
    B, S, I = x_bsi.shape
    H = w_hh.shape[0]
    O = fc_w.shape[1]

    Hp = _round_up(max(H, _LANE), _LANE)       # lane-aligned hidden / gates
    Ip = _round_up(max(I, _LANE), _LANE)       # lane-aligned input features
    Bp = _round_up(max(B, _SUBLANE), _SUBLANE)  # sublane-aligned batch

    # Pad each gate block separately so gate k lives at lanes [k*Hp,(k+1)*Hp).
    def pad_gates(w, pad_rows_to=None):
        rows = w.shape[0]
        w4 = w.reshape(rows, 4, H)
        w4 = jnp.pad(w4, ((0, 0), (0, 0), (0, Hp - H)))
        if pad_rows_to is not None:
            w4 = jnp.pad(w4, ((0, pad_rows_to - rows), (0, 0), (0, 0)))
        return w4.reshape(-1, 4 * Hp)

    w_ih_p = pad_gates(w_ih, pad_rows_to=Ip)        # (Ip, 4*Hp)
    b_p = pad_gates(b)                              # (1,  4*Hp)
    w_hh_p = pad_gates(w_hh, pad_rows_to=Hp)        # (Hp, 4*Hp)
    fc_w_p = jnp.pad(fc_w, ((0, Hp - H), (0, 0)))   # (Hp, O)

    # (B,S,I) -> (S,B,I) -> pad batch/features -> (S*Bp, Ip) for one matmul.
    x_sbi = jnp.transpose(x_bsi, (1, 0, 2))
    x_sbi = jnp.pad(x_sbi, ((0, 0), (0, Bp - B), (0, Ip - I)))
    x2d = x_sbi.reshape(S * Bp, Ip)

    vmem_spec = pl.BlockSpec(memory_space=pltpu.MemorySpace.VMEM)
    out_p = pl.pallas_call(
        lstm_fc_kernel,
        out_shape=jax.ShapeDtypeStruct((Bp, O), jnp.float32),
        in_specs=[vmem_spec] * 6,
        out_specs=vmem_spec,
        scratch_shapes=[pltpu.VMEM((S * Bp, 4 * Hp), jnp.float32)],
    )(x2d, w_ih_p, b_p, w_hh_p, fc_w_p, fc_b)

    return out_p[:B]


def lstm_reference(x_bsi, params):
    """Pure-JAX reference (same math as torch.nn.LSTM + Linear)."""
    w_ih, w_hh, b, fc_w, fc_b = params
    B = x_bsi.shape[0]
    H = w_hh.shape[0]

    def step(carry, x_t):
        h, c = carry
        gates = x_t @ w_ih + h @ w_hh + b[0]
        i = jax.nn.sigmoid(gates[:, 0:H])
        f = jax.nn.sigmoid(gates[:, H:2 * H])
        g = jnp.tanh(gates[:, 2 * H:3 * H])
        o = jax.nn.sigmoid(gates[:, 3 * H:4 * H])
        c = f * c + i * g
        h = o * jnp.tanh(c)
        return (h, c), None

    h0 = jnp.zeros((B, H), jnp.float32)
    c0 = jnp.zeros((B, H), jnp.float32)
    (hT, _), _ = jax.lax.scan(step, (h0, c0),
                              jnp.transpose(x_bsi, (1, 0, 2)))
    return hT @ fc_w + fc_b[0]


def init_params(key, input_size, hidden_size, output_size):
    k = 1.0 / jnp.sqrt(hidden_size)
    ks = jax.random.split(key, 6)
    # Stored pre-transposed so both kernel and reference do x @ W directly.
    w_ih = jax.random.uniform(ks[0], (input_size, 4 * hidden_size),
                              jnp.float32, -k, k)
    w_hh = jax.random.uniform(ks[1], (hidden_size, 4 * hidden_size),
                              jnp.float32, -k, k)
    b_ih = jax.random.uniform(ks[2], (1, 4 * hidden_size), jnp.float32, -k, k)
    b_hh = jax.random.uniform(ks[3], (1, 4 * hidden_size), jnp.float32, -k, k)
    fc_w = jax.random.uniform(ks[4], (hidden_size, output_size),
                              jnp.float32, -k, k)
    fc_b = jax.random.uniform(ks[5], (1, output_size), jnp.float32, -k, k)
    return (w_ih, w_hh, b_ih + b_hh, fc_w, fc_b)


if __name__ == "__main__":
    batch, seq, input_size, hidden_size, output_size = 2, 8, 1, 64, 1

    key = jax.random.PRNGKey(0)
    k_x, k_p = jax.random.split(key)
    x = jax.random.normal(k_x, (batch, seq, input_size), jnp.float32)
    params = init_params(k_p, input_size, hidden_size, output_size)

    out = jax.block_until_ready(lstm_model_forward(x, params))
    ref = jax.block_until_ready(lstm_reference(x, params))

    assert out.shape == (batch, output_size)
    assert jnp.allclose(out, ref, atol=1e-5, rtol=1e-5), (out, ref)
    print("KERNEL_OK")
</pallas_src>

<mosaic_0001>
module attributes {stable_mosaic.version = 11 : i64} {
  func.func @lstm_fc_kernel(%arg0: memref<64x128xf32, #tpu.memory_space<vmem>>, %arg1: memref<128x512xf32, #tpu.memory_space<vmem>>, %arg2: memref<1x512xf32, #tpu.memory_space<vmem>>, %arg3: memref<128x512xf32, #tpu.memory_space<vmem>>, %arg4: memref<128x1xf32, #tpu.memory_space<vmem>>, %arg5: memref<1x1xf32, #tpu.memory_space<vmem>>, %arg6: memref<8x1xf32, #tpu.memory_space<vmem>>, %arg7: memref<64x512xf32, #tpu.memory_space<vmem>>) attributes {dimension_semantics = [], scalar_prefetch = 0 : i64, scratch_operands = 1 : i64, tpu.core_type = #tpu.core_type<tc>} {
    %c0 = arith.constant 0 : index
    %c0_0 = arith.constant 0 : index
    %0 = vector.load %arg0[%c0, %c0_0] : memref<64x128xf32, #tpu.memory_space<vmem>>, vector<64x128xf32>
    %c0_1 = arith.constant 0 : index
    %c0_2 = arith.constant 0 : index
    %1 = vector.load %arg1[%c0_1, %c0_2] : memref<128x512xf32, #tpu.memory_space<vmem>>, vector<128x512xf32>
    %cst = arith.constant dense<0.000000e+00> : vector<64x512xf32>
    %2 = tpu.matmul %0, %1, %cst {dimension_numbers = #tpu.dot_dimension_numbers<[1], [0], [0], [1], [0, 0, 1, 1], [], []>} : vector<64x128xf32>, vector<128x512xf32>, vector<64x512xf32> -> vector<64x512xf32>
    %c0_3 = arith.constant 0 : index
    %c0_4 = arith.constant 0 : index
    %3 = vector.load %arg2[%c0_3, %c0_4] : memref<1x512xf32, #tpu.memory_space<vmem>>, vector<1x512xf32>
    %4 = vector.broadcast %3 : vector<1x512xf32> to vector<64x512xf32>
    %5 = arith.addf %2, %4 : vector<64x512xf32>
    %c0_5 = arith.constant 0 : index
    %c0_6 = arith.constant 0 : index
    %6 = vector.load %arg7[%c0_5, %c0_6] : memref<64x512xf32, #tpu.memory_space<vmem>>, vector<64x512xf32>
    tpu.vector_store %arg7[%c0_5, %c0_6], %5 {strides = array<i32>} : memref<64x512xf32, #tpu.memory_space<vmem>>, vector<64x512xf32>,
    %cst_7 = arith.constant 0.000000e+00 : f32
    %7 = vector.broadcast %cst_7 : f32 to vector<8x128xf32>
    %cst_8 = arith.constant 0.000000e+00 : f32
    %8 = vector.broadcast %cst_8 : f32 to vector<8x128xf32>
    %c0_i32 = arith.constant 0 : i32
    %c8_i32 = arith.constant 8 : i32
    %9 = arith.muli %c0_i32, %c8_i32 : i32
    %10 = arith.index_cast %9 : i32 to index
    %c0_9 = arith.constant 0 : index
    %11 = vector.load %arg7[%10, %c0_9] : memref<64x512xf32, #tpu.memory_space<vmem>>, vector<8x512xf32>
    %c0_10 = arith.constant 0 : index
    %c0_11 = arith.constant 0 : index
    %12 = vector.load %arg3[%c0_10, %c0_11] : memref<128x512xf32, #tpu.memory_space<vmem>>, vector<128x512xf32>
    %cst_12 = arith.constant dense<0.000000e+00> : vector<8x512xf32>
    %13 = tpu.matmul %7, %12, %cst_12 {dimension_numbers = #tpu.dot_dimension_numbers<[1], [0], [0], [1], [0, 0, 1, 1], [], []>} : vector<8x128xf32>, vector<128x512xf32>, vector<8x512xf32> -> vector<8x512xf32>
    %14 = arith.addf %11, %13 : vector<8x512xf32>
    %15 = vector.extract_strided_slice %14 {offsets = [0, 0], sizes = [8, 128], strides = [1, 1]} : vector<8x512xf32> to vector<8x128xf32>
    %16 = arith.negf %15 : vector<8x128xf32>
    %17 = math.exp %16 : vector<8x128xf32>
    %cst_13 = arith.constant 1.000000e+00 : f32
    %18 = vector.broadcast %cst_13 : f32 to vector<8x128xf32>
    %19 = arith.addf %18, %17 : vector<8x128xf32>
    %20 = arith.divf %18, %19 : vector<8x128xf32>
    %21 = vector.extract_strided_slice %14 {offsets = [0, 128], sizes = [8, 128], strides = [1, 1]} : vector<8x512xf32> to vector<8x128xf32>
    %22 = arith.negf %21 : vector<8x128xf32>
    %23 = math.exp %22 : vector<8x128xf32>
    %cst_14 = arith.constant 1.000000e+00 : f32
    %24 = vector.broadcast %cst_14 : f32 to vector<8x128xf32>
    %25 = arith.addf %24, %23 : vector<8x128xf32>
    %26 = arith.divf %24, %25 : vector<8x128xf32>
    %27 = vector.extract_strided_slice %14 {offsets = [0, 256], sizes = [8, 128], strides = [1, 1]} : vector<8x512xf32> to vector<8x128xf32>
    %28 = math.tanh %27 : vector<8x128xf32>
    %29 = vector.extract_strided_slice %14 {offsets = [0, 384], sizes = [8, 128], strides = [1, 1]} : vector<8x512xf32> to vector<8x128xf32>
    %30 = arith.negf %29 : vector<8x128xf32>
    %31 = math.exp %30 : vector<8x128xf32>
    %cst_15 = arith.constant 1.000000e+00 : f32
    %32 = vector.broadcast %cst_15 : f32 to vector<8x128xf32>
    %33 = arith.addf %32, %31 : vector<8x128xf32>
    %34 = arith.divf %32, %33 : vector<8x128xf32>
    %35 = arith.mulf %26, %8 : vector<8x128xf32>
    %36 = arith.mulf %20, %28 : vector<8x128xf32>
    %37 = arith.addf %35, %36 : vector<8x128xf32>
    %38 = math.tanh %37 : vector<8x128xf32>
    %39 = arith.mulf %34, %38 : vector<8x128xf32>
    %c1_i32 = arith.constant 1 : i32
    %c8_i32_16 = arith.constant 8 : i32
    %40 = arith.muli %c1_i32, %c8_i32_16 : i32
    %41 = arith.index_cast %40 : i32 to index
    %c0_17 = arith.constant 0 : index
    %42 = vector.load %arg7[%41, %c0_17] : memref<64x512xf32, #tpu.memory_space<vmem>>, vector<8x512xf32>
    %c0_18 = arith.constant 0 : index
    %c0_19 = arith.constant 0 : index
    %43 = vector.load %arg3[%c0_18, %c0_19] : memref<128x512xf32, #tpu.memory_space<vmem>>, vector<128x512xf32>
    %cst_20 = arith.constant dense<0.000000e+00> : vector<8x512xf32>
    %44 = tpu.matmul %39, %43, %cst_20 {dimension_numbers = #tpu.dot_dimension_numbers<[1], [0], [0], [1], [0, 0, 1, 1], [], []>} : vector<8x128xf32>, vector<128x512xf32>, vector<8x512xf32> -> vector<8x512xf32>
    %45 = arith.addf %42, %44 : vector<8x512xf32>
    %46 = vector.extract_strided_slice %45 {offsets = [0, 0], sizes = [8, 128], strides = [1, 1]} : vector<8x512xf32> to vector<8x128xf32>
    %47 = arith.negf %46 : vector<8x128xf32>
    %48 = math.exp %47 : vector<8x128xf32>
    %cst_21 = arith.constant 1.000000e+00 : f32
    %49 = vector.broadcast %cst_21 : f32 to vector<8x128xf32>
    %50 = arith.addf %49, %48 : vector<8x128xf32>
    %51 = arith.divf %49, %50 : vector<8x128xf32>
    %52 = vector.extract_strided_slice %45 {offsets = [0, 128], sizes = [8, 128], strides = [1, 1]} : vector<8x512xf32> to vector<8x128xf32>
    %53 = arith.negf %52 : vector<8x128xf32>
    %54 = math.exp %53 : vector<8x128xf32>
    %cst_22 = arith.constant 1.000000e+00 : f32
    %55 = vector.broadcast %cst_22 : f32 to vector<8x128xf32>
    %56 = arith.addf %55, %54 : vector<8x128xf32>
    %57 = arith.divf %55, %56 : vector<8x128xf32>
    %58 = vector.extract_strided_slice %45 {offsets = [0, 256], sizes = [8, 128], strides = [1, 1]} : vector<8x512xf32> to vector<8x128xf32>
    %59 = math.tanh %58 : vector<8x128xf32>
    %60 = vector.extract_strided_slice %45 {offsets = [0, 384], sizes = [8, 128], strides = [1, 1]} : vector<8x512xf32> to vector<8x128xf32>
    %61 = arith.negf %60 : vector<8x128xf32>
    %62 = math.exp %61 : vector<8x128xf32>
    %cst_23 = arith.constant 1.000000e+00 : f32
    %63 = vector.broadcast %cst_23 : f32 to vector<8x128xf32>
    %64 = arith.addf %63, %62 : vector<8x128xf32>
    %65 = arith.divf %63, %64 : vector<8x128xf32>
    %66 = arith.mulf %57, %37 : vector<8x128xf32>
    %67 = arith.mulf %51, %59 : vector<8x128xf32>
    %68 = arith.addf %66, %67 : vector<8x128xf32>
    %69 = math.tanh %68 : vector<8x128xf32>
    %70 = arith.mulf %65, %69 : vector<8x128xf32>
    %c2_i32 = arith.constant 2 : i32
    %c8_i32_24 = arith.constant 8 : i32
    %71 = arith.muli %c2_i32, %c8_i32_24 : i32
    %72 = arith.index_cast %71 : i32 to index
    %c0_25 = arith.constant 0 : index
    %73 = vector.load %arg7[%72, %c0_25] : memref<64x512xf32, #tpu.memory_space<vmem>>, vector<8x512xf32>
    %c0_26 = arith.constant 0 : index
    %c0_27 = arith.constant 0 : index
    %74 = vector.load %arg3[%c0_26, %c0_27] : memref<128x512xf32, #tpu.memory_space<vmem>>, vector<128x512xf32>
    %cst_28 = arith.constant dense<0.000000e+00> : vector<8x512xf32>
    %75 = tpu.matmul %70, %74, %cst_28 {dimension_numbers = #tpu.dot_dimension_numbers<[1], [0], [0], [1], [0, 0, 1, 1], [], []>} : vector<8x128xf32>, vector<128x512xf32>, vector<8x512xf32> -> vector<8x512xf32>
    %76 = arith.addf %73, %75 : vector<8x512xf32>
    %77 = vector.extract_strided_slice %76 {offsets = [0, 0], sizes = [8, 128], strides = [1, 1]} : vector<8x512xf32> to vector<8x128xf32>
    %78 = arith.negf %77 : vector<8x128xf32>
    %79 = math.exp %78 : vector<8x128xf32>
    %cst_29 = arith.constant 1.000000e+00 : f32
    %80 = vector.broadcast %cst_29 : f32 to vector<8x128xf32>
    %81 = arith.addf %80, %79 : vector<8x128xf32>
    %82 = arith.divf %80, %81 : vector<8x128xf32>
    %83 = vector.extract_strided_slice %76 {offsets = [0, 128], sizes = [8, 128], strides = [1, 1]} : vector<8x512xf32> to vector<8x128xf32>
    %84 = arith.negf %83 : vector<8x128xf32>
    %85 = math.exp %84 : vector<8x128xf32>
    %cst_30 = arith.constant 1.000000e+00 : f32
    %86 = vector.broadcast %cst_30 : f32 to vector<8x128xf32>
    %87 = arith.addf %86, %85 : vector<8x128xf32>
    %88 = arith.divf %86, %87 : vector<8x128xf32>
    %89 = vector.extract_strided_slice %76 {offsets = [0, 256], sizes = [8, 128], strides = [1, 1]} : vector<8x512xf32> to vector<8x128xf32>
    %90 = math.tanh %89 : vector<8x128xf32>
    %91 = vector.extract_strided_slice %76 {offsets = [0, 384], sizes = [8, 128], strides = [1, 1]} : vector<8x512xf32> to vector<8x128xf32>
    %92 = arith.negf %91 : vector<8x128xf32>
    %93 = math.exp %92 : vector<8x128xf32>
    %cst_31 = arith.constant 1.000000e+00 : f32
    %94 = vector.broadcast %cst_31 : f32 to vector<8x128xf32>
    %95 = arith.addf %94, %93 : vector<8x128xf32>
    %96 = arith.divf %94, %95 : vector<8x128xf32>
    %97 = arith.mulf %88, %68 : vector<8x128xf32>
    %98 = arith.mulf %82, %90 : vector<8x128xf32>
    %99 = arith.addf %97, %98 : vector<8x128xf32>
    %100 = math.tanh %99 : vector<8x128xf32>
    %101 = arith.mulf %96, %100 : vector<8x128xf32>
    %c3_i32 = arith.constant 3 : i32
    %c8_i32_32 = arith.constant 8 : i32
    %102 = arith.muli %c3_i32, %c8_i32_32 : i32
    %103 = arith.index_cast %102 : i32 to index
    %c0_33 = arith.constant 0 : index
    %104 = vector.load %arg7[%103, %c0_33] : memref<64x512xf32, #tpu.memory_space<vmem>>, vector<8x512xf32>
    %c0_34 = arith.constant 0 : index
    %c0_35 = arith.constant 0 : index
    %105 = vector.load %arg3[%c0_34, %c0_35] : memref<128x512xf32, #tpu.memory_space<vmem>>, vector<128x512xf32>
    %cst_36 = arith.constant dense<0.000000e+00> : vector<8x512xf32>
    %106 = tpu.matmul %101, %105, %cst_36 {dimension_numbers = #tpu.dot_dimension_numbers<[1], [0], [0], [1], [0, 0, 1, 1], [], []>} : vector<8x128xf32>, vector<128x512xf32>, vector<8x512xf32> -> vector<8x512xf32>
    %107 = arith.addf %104, %106 : vector<8x512xf32>
    %108 = vector.extract_strided_slice %107 {offsets = [0, 0], sizes = [8, 128], strides = [1, 1]} : vector<8x512xf32> to vector<8x128xf32>
    %109 = arith.negf %108 : vector<8x128xf32>
    %110 = math.exp %109 : vector<8x128xf32>
    %cst_37 = arith.constant 1.000000e+00 : f32
    %111 = vector.broadcast %cst_37 : f32 to vector<8x128xf32>
    %112 = arith.addf %111, %110 : vector<8x128xf32>
    %113 = arith.divf %111, %112 : vector<8x128xf32>
    %114 = vector.extract_strided_slice %107 {offsets = [0, 128], sizes = [8, 128], strides = [1, 1]} : vector<8x512xf32> to vector<8x128xf32>
    %115 = arith.negf %114 : vector<8x128xf32>
    %116 = math.exp %115 : vector<8x128xf32>
    %cst_38 = arith.constant 1.000000e+00 : f32
    %117 = vector.broadcast %cst_38 : f32 to vector<8x128xf32>
    %118 = arith.addf %117, %116 : vector<8x128xf32>
    %119 = arith.divf %117, %118 : vector<8x128xf32>
    %120 = vector.extract_strided_slice %107 {offsets = [0, 256], sizes = [8, 128], strides = [1, 1]} : vector<8x512xf32> to vector<8x128xf32>
    %121 = math.tanh %120 : vector<8x128xf32>
    %122 = vector.extract_strided_slice %107 {offsets = [0, 384], sizes = [8, 128], strides = [1, 1]} : vector<8x512xf32> to vector<8x128xf32>
    %123 = arith.negf %122 : vector<8x128xf32>
    %124 = math.exp %123 : vector<8x128xf32>
    %cst_39 = arith.constant 1.000000e+00 : f32
    %125 = vector.broadcast %cst_39 : f32 to vector<8x128xf32>
    %126 = arith.addf %125, %124 : vector<8x128xf32>
    %127 = arith.divf %125, %126 : vector<8x128xf32>
    %128 = arith.mulf %119, %99 : vector<8x128xf32>
    %129 = arith.mulf %113, %121 : vector<8x128xf32>
    %130 = arith.addf %128, %129 : vector<8x128xf32>
    %131 = math.tanh %130 : vector<8x128xf32>
    %132 = arith.mulf %127, %131 : vector<8x128xf32>
    %c4_i32 = arith.constant 4 : i32
    %c8_i32_40 = arith.constant 8 : i32
    %133 = arith.muli %c4_i32, %c8_i32_40 : i32
    %134 = arith.index_cast %133 : i32 to index
    %c0_41 = arith.constant 0 : index
    %135 = vector.load %arg7[%134, %c0_41] : memref<64x512xf32, #tpu.memory_space<vmem>>, vector<8x512xf32>
    %c0_42 = arith.constant 0 : index
    %c0_43 = arith.constant 0 : index
    %136 = vector.load %arg3[%c0_42, %c0_43] : memref<128x512xf32, #tpu.memory_space<vmem>>, vector<128x512xf32>
    %cst_44 = arith.constant dense<0.000000e+00> : vector<8x512xf32>
    %137 = tpu.matmul %132, %136, %cst_44 {dimension_numbers = #tpu.dot_dimension_numbers<[1], [0], [0], [1], [0, 0, 1, 1], [], []>} : vector<8x128xf32>, vector<128x512xf32>, vector<8x512xf32> -> vector<8x512xf32>
    %138 = arith.addf %135, %137 : vector<8x512xf32>
    %139 = vector.extract_strided_slice %138 {offsets = [0, 0], sizes = [8, 128], strides = [1, 1]} : vector<8x512xf32> to vector<8x128xf32>
    %140 = arith.negf %139 : vector<8x128xf32>
    %141 = math.exp %140 : vector<8x128xf32>
    %cst_45 = arith.constant 1.000000e+00 : f32
    %142 = vector.broadcast %cst_45 : f32 to vector<8x128xf32>
    %143 = arith.addf %142, %141 : vector<8x128xf32>
    %144 = arith.divf %142, %143 : vector<8x128xf32>
    %145 = vector.extract_strided_slice %138 {offsets = [0, 128], sizes = [8, 128], strides = [1, 1]} : vector<8x512xf32> to vector<8x128xf32>
    %146 = arith.negf %145 : vector<8x128xf32>
    %147 = math.exp %146 : vector<8x128xf32>
    %cst_46 = arith.constant 1.000000e+00 : f32
    %148 = vector.broadcast %cst_46 : f32 to vector<8x128xf32>
    %149 = arith.addf %148, %147 : vector<8x128xf32>
    %150 = arith.divf %148, %149 : vector<8x128xf32>
    %151 = vector.extract_strided_slice %138 {offsets = [0, 256], sizes = [8, 128], strides = [1, 1]} : vector<8x512xf32> to vector<8x128xf32>
    %152 = math.tanh %151 : vector<8x128xf32>
    %153 = vector.extract_strided_slice %138 {offsets = [0, 384], sizes = [8, 128], strides = [1, 1]} : vector<8x512xf32> to vector<8x128xf32>
    %154 = arith.negf %153 : vector<8x128xf32>
    %155 = math.exp %154 : vector<8x128xf32>
    %cst_47 = arith.constant 1.000000e+00 : f32
    %156 = vector.broadcast %cst_47 : f32 to vector<8x128xf32>
    %157 = arith.addf %156, %155 : vector<8x128xf32>
    %158 = arith.divf %156, %157 : vector<8x128xf32>
    %159 = arith.mulf %150, %130 : vector<8x128xf32>
    %160 = arith.mulf %144, %152 : vector<8x128xf32>
    %161 = arith.addf %159, %160 : vector<8x128xf32>
    %162 = math.tanh %161 : vector<8x128xf32>
    %163 = arith.mulf %158, %162 : vector<8x128xf32>
    %c5_i32 = arith.constant 5 : i32
    %c8_i32_48 = arith.constant 8 : i32
    %164 = arith.muli %c5_i32, %c8_i32_48 : i32
    %165 = arith.index_cast %164 : i32 to index
    %c0_49 = arith.constant 0 : index
    %166 = vector.load %arg7[%165, %c0_49] : memref<64x512xf32, #tpu.memory_space<vmem>>, vector<8x512xf32>
    %c0_50 = arith.constant 0 : index
    %c0_51 = arith.constant 0 : index
    %167 = vector.load %arg3[%c0_50, %c0_51] : memref<128x512xf32, #tpu.memory_space<vmem>>, vector<128x512xf32>
    %cst_52 = arith.constant dense<0.000000e+00> : vector<8x512xf32>
    %168 = tpu.matmul %163, %167, %cst_52 {dimension_numbers = #tpu.dot_dimension_numbers<[1], [0], [0], [1], [0, 0, 1, 1], [], []>} : vector<8x128xf32>, vector<128x512xf32>, vector<8x512xf32> -> vector<8x512xf32>
    %169 = arith.addf %166, %168 : vector<8x512xf32>
    %170 = vector.extract_strided_slice %169 {offsets = [0, 0], sizes = [8, 128], strides = [1, 1]} : vector<8x512xf32> to vector<8x128xf32>
    %171 = arith.negf %170 : vector<8x128xf32>
    %172 = math.exp %171 : vector<8x128xf32>
    %cst_53 = arith.constant 1.000000e+00 : f32
    %173 = vector.broadcast %cst_53 : f32 to vector<8x128xf32>
    %174 = arith.addf %173, %172 : vector<8x128xf32>
    %175 = arith.divf %173, %174 : vector<8x128xf32>
    %176 = vector.extract_strided_slice %169 {offsets = [0, 128], sizes = [8, 128], strides = [1, 1]} : vector<8x512xf32> to vector<8x128xf32>
    %177 = arith.negf %176 : vector<8x128xf32>
    %178 = math.exp %177 : vector<8x128xf32>
    %cst_54 = arith.constant 1.000000e+00 : f32
    %179 = vector.broadcast %cst_54 : f32 to vector<8x128xf32>
    %180 = arith.addf %179, %178 : vector<8x128xf32>
    %181 = arith.divf %179, %180 : vector<8x128xf32>
    %182 = vector.extract_strided_slice %169 {offsets = [0, 256], sizes = [8, 128], strides = [1, 1]} : vector<8x512xf32> to vector<8x128xf32>
    %183 = math.tanh %182 : vector<8x128xf32>
    %184 = vector.extract_strided_slice %169 {offsets = [0, 384], sizes = [8, 128], strides = [1, 1]} : vector<8x512xf32> to vector<8x128xf32>
    %185 = arith.negf %184 : vector<8x128xf32>
    %186 = math.exp %185 : vector<8x128xf32>
    %cst_55 = arith.constant 1.000000e+00 : f32
    %187 = vector.broadcast %cst_55 : f32 to vector<8x128xf32>
    %188 = arith.addf %187, %186 : vector<8x128xf32>
    %189 = arith.divf %187, %188 : vector<8x128xf32>
    %190 = arith.mulf %181, %161 : vector<8x128xf32>
    %191 = arith.mulf %175, %183 : vector<8x128xf32>
    %192 = arith.addf %190, %191 : vector<8x128xf32>
    %193 = math.tanh %192 : vector<8x128xf32>
    %194 = arith.mulf %189, %193 : vector<8x128xf32>
    %c6_i32 = arith.constant 6 : i32
    %c8_i32_56 = arith.constant 8 : i32
    %195 = arith.muli %c6_i32, %c8_i32_56 : i32
    %196 = arith.index_cast %195 : i32 to index
    %c0_57 = arith.constant 0 : index
    %197 = vector.load %arg7[%196, %c0_57] : memref<64x512xf32, #tpu.memory_space<vmem>>, vector<8x512xf32>
    %c0_58 = arith.constant 0 : index
    %c0_59 = arith.constant 0 : index
    %198 = vector.load %arg3[%c0_58, %c0_59] : memref<128x512xf32, #tpu.memory_space<vmem>>, vector<128x512xf32>
    %cst_60 = arith.constant dense<0.000000e+00> : vector<8x512xf32>
    %199 = tpu.matmul %194, %198, %cst_60 {dimension_numbers = #tpu.dot_dimension_numbers<[1], [0], [0], [1], [0, 0, 1, 1], [], []>} : vector<8x128xf32>, vector<128x512xf32>, vector<8x512xf32> -> vector<8x512xf32>
    %200 = arith.addf %197, %199 : vector<8x512xf32>
    %201 = vector.extract_strided_slice %200 {offsets = [0, 0], sizes = [8, 128], strides = [1, 1]} : vector<8x512xf32> to vector<8x128xf32>
    %202 = arith.negf %201 : vector<8x128xf32>
    %203 = math.exp %202 : vector<8x128xf32>
    %cst_61 = arith.constant 1.000000e+00 : f32
    %204 = vector.broadcast %cst_61 : f32 to vector<8x128xf32>
    %205 = arith.addf %204, %203 : vector<8x128xf32>
    %206 = arith.divf %204, %205 : vector<8x128xf32>
    %207 = vector.extract_strided_slice %200 {offsets = [0, 128], sizes = [8, 128], strides = [1, 1]} : vector<8x512xf32> to vector<8x128xf32>
    %208 = arith.negf %207 : vector<8x128xf32>
    %209 = math.exp %208 : vector<8x128xf32>
    %cst_62 = arith.constant 1.000000e+00 : f32
    %210 = vector.broadcast %cst_62 : f32 to vector<8x128xf32>
    %211 = arith.addf %210, %209 : vector<8x128xf32>
    %212 = arith.divf %210, %211 : vector<8x128xf32>
    %213 = vector.extract_strided_slice %200 {offsets = [0, 256], sizes = [8, 128], strides = [1, 1]} : vector<8x512xf32> to vector<8x128xf32>
    %214 = math.tanh %213 : vector<8x128xf32>
    %215 = vector.extract_strided_slice %200 {offsets = [0, 384], sizes = [8, 128], strides = [1, 1]} : vector<8x512xf32> to vector<8x128xf32>
    %216 = arith.negf %215 : vector<8x128xf32>
    %217 = math.exp %216 : vector<8x128xf32>
    %cst_63 = arith.constant 1.000000e+00 : f32
    %218 = vector.broadcast %cst_63 : f32 to vector<8x128xf32>
    %219 = arith.addf %218, %217 : vector<8x128xf32>
    %220 = arith.divf %218, %219 : vector<8x128xf32>
    %221 = arith.mulf %212, %192 : vector<8x128xf32>
    %222 = arith.mulf %206, %214 : vector<8x128xf32>
    %223 = arith.addf %221, %222 : vector<8x128xf32>
    %224 = math.tanh %223 : vector<8x128xf32>
    %225 = arith.mulf %220, %224 : vector<8x128xf32>
    %c7_i32 = arith.constant 7 : i32
    %c8_i32_64 = arith.constant 8 : i32
    %226 = arith.muli %c7_i32, %c8_i32_64 : i32
    %227 = arith.index_cast %226 : i32 to index
    %c0_65 = arith.constant 0 : index
    %228 = vector.load %arg7[%227, %c0_65] : memref<64x512xf32, #tpu.memory_space<vmem>>, vector<8x512xf32>
    %c0_66 = arith.constant 0 : index
    %c0_67 = arith.constant 0 : index
    %229 = vector.load %arg3[%c0_66, %c0_67] : memref<128x512xf32, #tpu.memory_space<vmem>>, vector<128x512xf32>
    %cst_68 = arith.constant dense<0.000000e+00> : vector<8x512xf32>
    %230 = tpu.matmul %225, %229, %cst_68 {dimension_numbers = #tpu.dot_dimension_numbers<[1], [0], [0], [1], [0, 0, 1, 1], [], []>} : vector<8x128xf32>, vector<128x512xf32>, vector<8x512xf32> -> vector<8x512xf32>
    %231 = arith.addf %228, %230 : vector<8x512xf32>
    %232 = vector.extract_strided_slice %231 {offsets = [0, 0], sizes = [8, 128], strides = [1, 1]} : vector<8x512xf32> to vector<8x128xf32>
    %233 = arith.negf %232 : vector<8x128xf32>
    %234 = math.exp %233 : vector<8x128xf32>
    %cst_69 = arith.constant 1.000000e+00 : f32
    %235 = vector.broadcast %cst_69 : f32 to vector<8x128xf32>
    %236 = arith.addf %235, %234 : vector<8x128xf32>
    %237 = arith.divf %235, %236 : vector<8x128xf32>
    %238 = vector.extract_strided_slice %231 {offsets = [0, 128], sizes = [8, 128], strides = [1, 1]} : vector<8x512xf32> to vector<8x128xf32>
    %239 = arith.negf %238 : vector<8x128xf32>
    %240 = math.exp %239 : vector<8x128xf32>
    %cst_70 = arith.constant 1.000000e+00 : f32
    %241 = vector.broadcast %cst_70 : f32 to vector<8x128xf32>
    %242 = arith.addf %241, %240 : vector<8x128xf32>
    %243 = arith.divf %241, %242 : vector<8x128xf32>
    %244 = vector.extract_strided_slice %231 {offsets = [0, 256], sizes = [8, 128], strides = [1, 1]} : vector<8x512xf32> to vector<8x128xf32>
    %245 = math.tanh %244 : vector<8x128xf32>
    %246 = vector.extract_strided_slice %231 {offsets = [0, 384], sizes = [8, 128], strides = [1, 1]} : vector<8x512xf32> to vector<8x128xf32>
    %247 = arith.negf %246 : vector<8x128xf32>
    %248 = math.exp %247 : vector<8x128xf32>
    %cst_71 = arith.constant 1.000000e+00 : f32
    %249 = vector.broadcast %cst_71 : f32 to vector<8x128xf32>
    %250 = arith.addf %249, %248 : vector<8x128xf32>
    %251 = arith.divf %249, %250 : vector<8x128xf32>
    %252 = arith.mulf %243, %223 : vector<8x128xf32>
    %253 = arith.mulf %237, %245 : vector<8x128xf32>
    %254 = arith.addf %252, %253 : vector<8x128xf32>
    %255 = math.tanh %254 : vector<8x128xf32>
    %256 = arith.mulf %251, %255 : vector<8x128xf32>
    %c8_i32_72 = arith.constant 8 : i32
    %c0_73 = arith.constant 0 : index
    %c0_74 = arith.constant 0 : index
    %257 = vector.load %arg4[%c0_73, %c0_74] : memref<128x1xf32, #tpu.memory_space<vmem>>, vector<128x1xf32>
    %cst_75 = arith.constant dense<0.000000e+00> : vector<8x1xf32>
    %258 = tpu.matmul %256, %257, %cst_75 {dimension_numbers = #tpu.dot_dimension_numbers<[1], [0], [0], [1], [0, 0, 1, 1], [], []>} : vector<8x128xf32>, vector<128x1xf32>, vector<8x1xf32> -> vector<8x1xf32>
    %c0_76 = arith.constant 0 : index
    %c0_77 = arith.constant 0 : index
    %259 = vector.load %arg5[%c0_76, %c0_77] : memref<1x1xf32, #tpu.memory_space<vmem>>, vector<1x1xf32>
    %260 = vector.broadcast %259 : vector<1x1xf32> to vector<8x1xf32>
    %261 = arith.addf %258, %260 : vector<8x1xf32>
    %c0_78 = arith.constant 0 : index
    %c0_79 = arith.constant 0 : index
    %262 = vector.load %arg6[%c0_78, %c0_79] : memref<8x1xf32, #tpu.memory_space<vmem>>, vector<8x1xf32>
    tpu.vector_store %arg6[%c0_78, %c0_79], %261 {strides = array<i32>} : memref<8x1xf32, #tpu.memory_space<vmem>>, vector<8x1xf32>,
    return
  }
}

</mosaic_0001>

<llo_original>
// kernel: tpu_custom_call.1
$region0: #{tpu_custom_call.1}
  #allocation0 [shape = 'u32[]', space=smem, size = 0x4, offset = 0x4, fixed_abs, tag = 'smem constant byte address 0x4 - core index']
  #allocation1 [shape = 'u32[72,128]{1,0:T(1,128)}', space=vmem, size = 0x9000, scoped, tag = 'internal scratch']
  #allocation2 [shape = 'f32[64,512]{1,0:T(8,128)}', space=vmem, size = 0x20000, scoped, tag = 'scratch operand']
  #allocation3 [shape = 'f32[1,1]{1,0:T(1,128)S(1)}', space=vmem, size = 0x200, scoped, tag = 'scoped memory for tpu_custom_call.1']
  %s0 = inlined_call_operand.vmem [shape: f32[64,128], index: 0, kind: input, shape index: {}]
  %s1 = inlined_call_operand.hbm [shape: f32[128,512], index: 1, kind: input, shape index: {}]
  %s2 = inlined_call_operand.vmem [shape: f32[1,512], index: 2, kind: input, shape index: {}]
  %s3 = inlined_call_operand.hbm [shape: f32[128,512], index: 3, kind: input, shape index: {}]
  %s4 = inlined_call_operand.vmem [shape: f32[128,1], index: 4, kind: input, shape index: {}]
  %s5 = inlined_call_operand.<no memory space> [shape: f32[1,1], index: 5, kind: input, shape index: {}]
  %s6 = inlined_call_operand.vmem [shape: f32[8,1], index: 6, kind: output, shape index: {}]
  %s7 = sld [smem:[#allocation0]]
  $region42: #{tpu_custom_call.1} parent=0
    _
  %s9 = ssub.s32 1, %s7
  %s10 = scalar_select 0, %s9, %s7
  %v11 = vstv %s5
  %12 = vst [vmem:[#allocation3] sm:$0x1] %v11
  $region1: #{tpu_custom_call.1} parent=0
    #allocation4 [shape = 'u8[262144]{0}', space=vmem, size = 0x40000, scoped, tag = 'input window, operand 1, single buffered']
    #allocation5 [shape = 's32[1]{0}', space=sflag, size = 0x4, scoped, tag = 'scoped memory for tpu_custom_call.1']
    #allocation6 [shape = 'u8[262144]{0}', space=vmem, size = 0x40000, scoped, tag = 'input window, operand 3, single buffered']
    #allocation7 [shape = 's32[1]{0}', space=sflag, size = 0x4, scoped, tag = 'scoped memory for tpu_custom_call.1']
    %13 = vsyncpa [#allocation5], 0
    %14 = vsyncpa [#allocation7], 0
    // Predicated region
    $region2: #{tpu_custom_call.1} parent=1 // pred_check
      _
    $region3: #{tpu_custom_call.1} parent=1 // pred_check_branch
      %16 = sbr.rel (0) target = $region5
    $region4: #{tpu_custom_call.1} parent=1 // pred_region
      _
    $region5: #{tpu_custom_call.1} parent=1 // pred_fallthru
      _
    // Predicated region
    $region6: #{tpu_custom_call.1} parent=1 // pred_check
      _
    $region7: #{tpu_custom_call.1} parent=1 // pred_check_branch
      %18 = sbr.rel (0) target = $region9
    $region8: #{tpu_custom_call.1} parent=1 // pred_region
      %20 = vsyncadd [#allocation5], 0
      %s21 = sshll.u32 %s1, 4
      %s22 = int_to_ptr.hbm [resolvable:$true] %s21
      %s23 = sshll.u32 [#allocation4], 4
      %s24 = int_to_ptr.vmem [resolvable:$true] %s23
      %29 = dma.hbm_to_vmem [thread:$0]  %s22, 8192, %s24, [#allocation5], 512, 512, 32
    $region9: #{tpu_custom_call.1} parent=1 // pred_fallthru
      _
    // Predicated region
    $region10: #{tpu_custom_call.1} parent=1 // pred_check
      _
    $region11: #{tpu_custom_call.1} parent=1 // pred_check_branch
      %31 = sbr.rel (0) target = $region13
    $region12: #{tpu_custom_call.1} parent=1 // pred_region
      _
    $region13: #{tpu_custom_call.1} parent=1 // pred_fallthru
      _
    // Predicated region
    $region14: #{tpu_custom_call.1} parent=1 // pred_check
      _
    $region15: #{tpu_custom_call.1} parent=1 // pred_check_branch
      %33 = sbr.rel (0) target = $region17
    $region16: #{tpu_custom_call.1} parent=1 // pred_region
      %35 = vsyncadd [#allocation7], 0
      %s36 = sshll.u32 %s3, 4
      %s37 = int_to_ptr.hbm [resolvable:$true] %s36
      %s38 = sshll.u32 [#allocation6], 4
      %s39 = int_to_ptr.vmem [resolvable:$true] %s38
      %44 = dma.hbm_to_vmem [thread:$0]  %s37, 8192, %s39, [#allocation7], 512, 512, 32
    $region17: #{tpu_custom_call.1} parent=1 // pred_fallthru
      _
    // Predicated region
    $region18: #{tpu_custom_call.1} parent=1 // pred_check
      _
    $region19: #{tpu_custom_call.1} parent=1 // pred_check_branch
      %46 = sbr.rel (0) target = $region21
    $region20: #{tpu_custom_call.1} parent=1 // pred_region
      _
    $region21: #{tpu_custom_call.1} parent=1 // pred_fallthru
      _
    // Predicated region
    $region22: #{tpu_custom_call.1} parent=1 // pred_check
      _
    $region23: #{tpu_custom_call.1} parent=1 // pred_check_branch
      %48 = sbr.rel (0) target = $region25
    $region24: #{tpu_custom_call.1} parent=1 // pred_region
      _
    $region25: #{tpu_custom_call.1} parent=1 // pred_fallthru
      _
    // Predicated region
    $region26: #{tpu_custom_call.1} parent=1 // pred_check
      _
    $region27: #{tpu_custom_call.1} parent=1 // pred_check_branch
      %50 = sbr.rel (0) target = $region29
    $region28: #{tpu_custom_call.1} parent=1 // pred_region
      %52 = dma.done [#allocation5], 8192
    $region29: #{tpu_custom_call.1} parent=1 // pred_fallthru
      _
    // Predicated region
    $region30: #{tpu_custom_call.1} parent=1 // pred_check
      _
    $region31: #{tpu_custom_call.1} parent=1 // pred_check_branch
      %54 = sbr.rel (0) target = $region33
    $region32: #{tpu_custom_call.1} parent=1 // pred_region
      %56 = dma.done [#allocation7], 8192
    $region33: #{tpu_custom_call.1} parent=1 // pred_fallthru
      _
    %v57 = vld [vmem:[%s0] sm:$0xff]
    %v58 = vld [vmem:[%s0 + $0x8] sm:$0xff]
    %v59 = vld [vmem:[%s0 + $0x10] sm:$0xff]
    %v60 = vld [vmem:[%s0 + $0x18] sm:$0xff]
    %v61 = vld [vmem:[%s0 + $0x20] sm:$0xff]
    %v62 = vld [vmem:[%s0 + $0x28] sm:$0xff]
    %v63 = vld [vmem:[%s0 + $0x30] sm:$0xff]
    %v64 = vld [vmem:[%s0 + $0x38] sm:$0xff]
    %v65 = vld [vmem:[#allocation4] sm:$0xff]
    %v66 = vld [vmem:[#allocation4 + $0x8] sm:$0xff]
    %v67 = vld [vmem:[#allocation4 + $0x10] sm:$0xff]
    %v68 = vld [vmem:[#allocation4 + $0x18] sm:$0xff]
    %v69 = vld [vmem:[#allocation4 + $0x20] sm:$0xff]
    %v70 = vld [vmem:[#allocation4 + $0x28] sm:$0xff]
    %v71 = vld [vmem:[#allocation4 + $0x30] sm:$0xff]
    %v72 = vld [vmem:[#allocation4 + $0x38] sm:$0xff]
    %v73 = vld [vmem:[#allocation4 + $0x40] sm:$0xff]
    %v74 = vld [vmem:[#allocation4 + $0x48] sm:$0xff]
    %v75 = vld [vmem:[#allocation4 + $0x50] sm:$0xff]
    %v76 = vld [vmem:[#allocation4 + $0x58] sm:$0xff]
    %v77 = vld [vmem:[#allocation4 + $0x60] sm:$0xff]
    %v78 = vld [vmem:[#allocation4 + $0x68] sm:$0xff]
    %v79 = vld [vmem:[#allocation4 + $0x70] sm:$0xff]
    %v80 = vld [vmem:[#allocation4 + $0x78] sm:$0xff]
    %v81 = vld [vmem:[#allocation4 + $0x80] sm:$0xff]
    %v82 = vld [vmem:[#allocation4 + $0x88] sm:$0xff]
    %v83 = vld [vmem:[#allocation4 + $0x90] sm:$0xff]
    %v84 = vld [vmem:[#allocation4 + $0x98] sm:$0xff]
    %v85 = vld [vmem:[#allocation4 + $0xa0] sm:$0xff]
    %v86 = vld [vmem:[#allocation4 + $0xa8] sm:$0xff]
    %v87 = vld [vmem:[#allocation4 + $0xb0] sm:$0xff]
    %v88 = vld [vmem:[#allocation4 + $0xb8] sm:$0xff]
    %v89 = vld [vmem:[#allocation4 + $0xc0] sm:$0xff]
    %v90 = vld [vmem:[#allocation4 + $0xc8] sm:$0xff]
    %v91 = vld [vmem:[#allocation4 + $0xd0] sm:$0xff]
    %v92 = vld [vmem:[#allocation4 + $0xd8] sm:$0xff]
    %v93 = vld [vmem:[#allocation4 + $0xe0] sm:$0xff]
    %v94 = vld [vmem:[#allocation4 + $0xe8] sm:$0xff]
    %v95 = vld [vmem:[#allocation4 + $0xf0] sm:$0xff]
    %v96 = vld [vmem:[#allocation4 + $0xf8] sm:$0xff]
    %v97 = vld [vmem:[#allocation4 + $0x100] sm:$0xff]
    %v98 = vld [vmem:[#allocation4 + $0x108] sm:$0xff]
    %v99 = vld [vmem:[#allocation4 + $0x110] sm:$0xff]
    %v100 = vld [vmem:[#allocation4 + $0x118] sm:$0xff]
    %v101 = vld [vmem:[#allocation4 + $0x120] sm:$0xff]
    %v102 = vld [vmem:[#allocation4 + $0x128] sm:$0xff]
    %v103 = vld [vmem:[#allocation4 + $0x130] sm:$0xff]
    %v104 = vld [vmem:[#allocation4 + $0x138] sm:$0xff]
    %v105 = vld [vmem:[#allocation4 + $0x140] sm:$0xff]
    %v106 = vld [vmem:[#allocation4 + $0x148] sm:$0xff]
    %v107 = vld [vmem:[#allocation4 + $0x150] sm:$0xff]
    %v108 = vld [vmem:[#allocation4 + $0x158] sm:$0xff]
    %v109 = vld [vmem:[#allocation4 + $0x160] sm:$0xff]
    %v110 = vld [vmem:[#allocation4 + $0x168] sm:$0xff]
    %v111 = vld [vmem:[#allocation4 + $0x170] sm:$0xff]
    %v112 = vld [vmem:[#allocation4 + $0x178] sm:$0xff]
    %v113 = vld [vmem:[#allocation4 + $0x180] sm:$0xff]
    %v114 = vld [vmem:[#allocation4 + $0x188] sm:$0xff]
    %v115 = vld [vmem:[#allocation4 + $0x190] sm:$0xff]
    %v116 = vld [vmem:[#allocation4 + $0x198] sm:$0xff]
    %v117 = vld [vmem:[#allocation4 + $0x1a0] sm:$0xff]
    %v118 = vld [vmem:[#allocation4 + $0x1a8] sm:$0xff]
    %v119 = vld [vmem:[#allocation4 + $0x1b0] sm:$0xff]
    %v120 = vld [vmem:[#allocation4 + $0x1b8] sm:$0xff]
    %v121 = vld [vmem:[#allocation4 + $0x1c0] sm:$0xff]
    %v122 = vld [vmem:[#allocation4 + $0x1c8] sm:$0xff]
    %v123 = vld [vmem:[#allocation4 + $0x1d0] sm:$0xff]
    %v124 = vld [vmem:[#allocation4 + $0x1d8] sm:$0xff]
    %v125 = vld [vmem:[#allocation4 + $0x1e0] sm:$0xff]
    %v126 = vld [vmem:[#allocation4 + $0x1e8] sm:$0xff]
    %v127 = vld [vmem:[#allocation4 + $0x1f0] sm:$0xff]
    %v128 = vld [vmem:[#allocation4 + $0x1f8] sm:$0xff]
    %v129 = vld [vmem:[%s2] sm:$0xf]
    %v131 = vperm.slane %v129, 0
    %v132 = vperm.slane %v129, 1
    %v133 = vperm.slane %v129, 2
    %v134 = vperm.slane %v129, 3
    %139 = vmatpush.msra.mxu0 %v125
    %140 = vmatpush.msra.mxu0 %v121
    %141 = vmatpush.msra.mxu0 %v117
    %142 = vmatpush.msra.mxu0 %v113
    %143 = vmatpush.msra.mxu0 %v109
    %144 = vmatpush.msra.mxu0 %v105
    %145 = vmatpush.msra.mxu0 %v101
    %146 = vmatpush.msra.mxu0 %v97
    %147 = vmatpush.msra.mxu0 %v93
    %148 = vmatpush.msra.mxu0 %v89
    %149 = vmatpush.msra.mxu0 %v85
    %150 = vmatpush.msra.mxu0 %v81
    %151 = vmatpush.msra.mxu0 %v77
    %152 = vmatpush.msra.mxu0 %v73
    %153 = vmatpush.msra.mxu0 %v69
    %154 = vmatpush.msra.mxu0 %v65
    %155 = vmatmul.f32.gmra.mxu0 %v57
    %v156 = vpop.f32.mrf.mxu0
    %v157 = vadd.f32 %v131, %v156
    %158 = vmatmul.f32.gmra.mxu0 %v58
    %v159 = vpop.f32.mrf.mxu0
    %v160 = vadd.f32 %v131, %v159
    %161 = vmatmul.f32.gmra.mxu0 %v59
    %v162 = vpop.f32.mrf.mxu0
    %v163 = vadd.f32 %v131, %v162
    %164 = vmatmul.f32.gmra.mxu0 %v60
    %v165 = vpop.f32.mrf.mxu0
    %v166 = vadd.f32 %v131, %v165
    %167 = vmatmul.f32.gmra.mxu0 %v61
    %v168 = vpop.f32.mrf.mxu0
    %v169 = vadd.f32 %v131, %v168
    %170 = vmatmul.f32.gmra.mxu0 %v62
    %v171 = vpop.f32.mrf.mxu0
    %v172 = vadd.f32 %v131, %v171
    %173 = vmatmul.f32.gmra.mxu0 %v63
    %v174 = vpop.f32.mrf.mxu0
    %v175 = vadd.f32 %v131, %v174
    %176 = vmatmul.f32.gmra.mxu0 %v64
    %v177 = vpop.f32.mrf.mxu0
    %v178 = vadd.f32 %v131, %v177
    %179 = vdwg.mxu0
    %180 = vmatpush.msra.mxu0 %v126
    %181 = vmatpush.msra.mxu0 %v122
    %182 = vmatpush.msra.mxu0 %v118
    %183 = vmatpush.msra.mxu0 %v114
    %184 = vmatpush.msra.mxu0 %v110
    %185 = vmatpush.msra.mxu0 %v106
    %186 = vmatpush.msra.mxu0 %v102
    %187 = vmatpush.msra.mxu0 %v98
    %188 = vmatpush.msra.mxu0 %v94
    %189 = vmatpush.msra.mxu0 %v90
    %190 = vmatpush.msra.mxu0 %v86
    %191 = vmatpush.msra.mxu0 %v82
    %192 = vmatpush.msra.mxu0 %v78
    %193 = vmatpush.msra.mxu0 %v74
    %194 = vmatpush.msra.mxu0 %v70
    %195 = vmatpush.msra.mxu0 %v66
    %196 = vmatmul.f32.gmra.mxu0 %v57
    %v197 = vpop.f32.mrf.mxu0
    %v198 = vadd.f32 %v132, %v197
    %199 = vmatmul.f32.gmra.mxu0 %v58
    %v200 = vpop.f32.mrf.mxu0
    %v201 = vadd.f32 %v132, %v200
    %202 = vmatmul.f32.gmra.mxu0 %v59
    %v203 = vpop.f32.mrf.mxu0
    %v204 = vadd.f32 %v132, %v203
    %205 = vmatmul.f32.gmra.mxu0 %v60
    %v206 = vpop.f32.mrf.mxu0
    %v207 = vadd.f32 %v132, %v206
    %208 = vmatmul.f32.gmra.mxu0 %v61
    %v209 = vpop.f32.mrf.mxu0
    %v210 = vadd.f32 %v132, %v209
    %211 = vmatmul.f32.gmra.mxu0 %v62
    %v212 = vpop.f32.mrf.mxu0
    %v213 = vadd.f32 %v132, %v212
    %214 = vmatmul.f32.gmra.mxu0 %v63
    %v215 = vpop.f32.mrf.mxu0
    %v216 = vadd.f32 %v132, %v215
    %217 = vmatmul.f32.gmra.mxu0 %v64
    %v218 = vpop.f32.mrf.mxu0
    %v219 = vadd.f32 %v132, %v218
    %220 = vdwg.mxu0
    %221 = vmatpush.msra.mxu0 %v127
    %222 = vmatpush.msra.mxu0 %v123
    %223 = vmatpush.msra.mxu0 %v119
    %224 = vmatpush.msra.mxu0 %v115
    %225 = vmatpush.msra.mxu0 %v111
    %226 = vmatpush.msra.mxu0 %v107
    %227 = vmatpush.msra.mxu0 %v103
    %228 = vmatpush.msra.mxu0 %v99
    %229 = vmatpush.msra.mxu0 %v95
    %230 = vmatpush.msra.mxu0 %v91
    %231 = vmatpush.msra.mxu0 %v87
    %232 = vmatpush.msra.mxu0 %v83
    %233 = vmatpush.msra.mxu0 %v79
    %234 = vmatpush.msra.mxu0 %v75
    %235 = vmatpush.msra.mxu0 %v71
    %236 = vmatpush.msra.mxu0 %v67
    %237 = vmatmul.f32.gmra.mxu0 %v57
    %v238 = vpop.f32.mrf.mxu0
    %v239 = vadd.f32 %v133, %v238
    %240 = vmatmul.f32.gmra.mxu0 %v58
    %v241 = vpop.f32.mrf.mxu0
    %v242 = vadd.f32 %v133, %v241
    %243 = vmatmul.f32.gmra.mxu0 %v59
    %v244 = vpop.f32.mrf.mxu0
    %v245 = vadd.f32 %v133, %v244
    %246 = vmatmul.f32.gmra.mxu0 %v60
    %v247 = vpop.f32.mrf.mxu0
    %v248 = vadd.f32 %v133, %v247
    %249 = vmatmul.f32.gmra.mxu0 %v61
    %v250 = vpop.f32.mrf.mxu0
    %v251 = vadd.f32 %v133, %v250
    %252 = vmatmul.f32.gmra.mxu0 %v62
    %v253 = vpop.f32.mrf.mxu0
    %v254 = vadd.f32 %v133, %v253
    %255 = vmatmul.f32.gmra.mxu0 %v63
    %v256 = vpop.f32.mrf.mxu0
    %v257 = vadd.f32 %v133, %v256
    %258 = vmatmul.f32.gmra.mxu0 %v64
    %v259 = vpop.f32.mrf.mxu0
    %v260 = vadd.f32 %v133, %v259
    %261 = vdwg.mxu0
    %262 = vmatpush.msra.mxu0 %v128
    %263 = vmatpush.msra.mxu0 %v124
    %264 = vmatpush.msra.mxu0 %v120
    %265 = vmatpush.msra.mxu0 %v116
    %266 = vmatpush.msra.mxu0 %v112
    %267 = vmatpush.msra.mxu0 %v108
    %268 = vmatpush.msra.mxu0 %v104
    %269 = vmatpush.msra.mxu0 %v100
    %270 = vmatpush.msra.mxu0 %v96
    %271 = vmatpush.msra.mxu0 %v92
    %272 = vmatpush.msra.mxu0 %v88
    %273 = vmatpush.msra.mxu0 %v84
    %274 = vmatpush.msra.mxu0 %v80
    %275 = vmatpush.msra.mxu0 %v76
    %276 = vmatpush.msra.mxu0 %v72
    %277 = vmatpush.msra.mxu0 %v68
    %278 = vmatmul.f32.gmra.mxu0 %v57
    %v279 = vpop.f32.mrf.mxu0
    %v280 = vadd.f32 %v134, %v279
    %281 = vmatmul.f32.gmra.mxu0 %v58
    %v282 = vpop.f32.mrf.mxu0
    %v283 = vadd.f32 %v134, %v282
    %284 = vmatmul.f32.gmra.mxu0 %v59
    %v285 = vpop.f32.mrf.mxu0
    %v286 = vadd.f32 %v134, %v285
    %287 = vmatmul.f32.gmra.mxu0 %v60
    %v288 = vpop.f32.mrf.mxu0
    %v289 = vadd.f32 %v134, %v288
    %290 = vmatmul.f32.gmra.mxu0 %v61
    %v291 = vpop.f32.mrf.mxu0
    %v292 = vadd.f32 %v134, %v291
    %293 = vmatmul.f32.gmra.mxu0 %v62
    %v294 = vpop.f32.mrf.mxu0
    %v295 = vadd.f32 %v134, %v294
    %296 = vmatmul.f32.gmra.mxu0 %v63
    %v297 = vpop.f32.mrf.mxu0
    %v298 = vadd.f32 %v134, %v297
    %299 = vmatmul.f32.gmra.mxu0 %v64
    %v300 = vpop.f32.mrf.mxu0
    %v301 = vadd.f32 %v134, %v300
    %302 = vdwg.mxu0
    %303 = vst [vmem:[#allocation2] sm:$0xff] %v157
    %304 = vst [vmem:[#allocation2 + $0x8] sm:$0xff] %v198
    %305 = vst [vmem:[#allocation2 + $0x10] sm:$0xff] %v239
    %306 = vst [vmem:[#allocation2 + $0x18] sm:$0xff] %v280
    %307 = vst [vmem:[#allocation2 + $0x20] sm:$0xff] %v160
    %308 = vst [vmem:[#allocation2 + $0x28] sm:$0xff] %v201
    %309 = vst [vmem:[#allocation2 + $0x30] sm:$0xff] %v242
    %310 = vst [vmem:[#allocation2 + $0x38] sm:$0xff] %v283
    %311 = vst [vmem:[#allocation2 + $0x40] sm:$0xff] %v163
    %312 = vst [vmem:[#allocation2 + $0x48] sm:$0xff] %v204
    %313 = vst [vmem:[#allocation2 + $0x50] sm:$0xff] %v245
    %314 = vst [vmem:[#allocation2 + $0x58] sm:$0xff] %v286
    %315 = vst [vmem:[#allocation2 + $0x60] sm:$0xff] %v166
    %316 = vst [vmem:[#allocation2 + $0x68] sm:$0xff] %v207
    %317 = vst [vmem:[#allocation2 + $0x70] sm:$0xff] %v248
    %318 = vst [vmem:[#allocation2 + $0x78] sm:$0xff] %v289
    %319 = vst [vmem:[#allocation2 + $0x80] sm:$0xff] %v169
    %320 = vst [vmem:[#allocation2 + $0x88] sm:$0xff] %v210
    %321 = vst [vmem:[#allocation2 + $0x90] sm:$0xff] %v251
    %322 = vst [vmem:[#allocation2 + $0x98] sm:$0xff] %v292
    %323 = vst [vmem:[#allocation2 + $0xa0] sm:$0xff] %v172
    %324 = vst [vmem:[#allocation2 + $0xa8] sm:$0xff] %v213
    %325 = vst [vmem:[#allocation2 + $0xb0] sm:$0xff] %v254
    %326 = vst [vmem:[#allocation2 + $0xb8] sm:$0xff] %v295
    %327 = vst [vmem:[#allocation2 + $0xc0] sm:$0xff] %v175
    %328 = vst [vmem:[#allocation2 + $0xc8] sm:$0xff] %v216
    %329 = vst [vmem:[#allocation2 + $0xd0] sm:$0xff] %v257
    %330 = vst [vmem:[#allocation2 + $0xd8] sm:$0xff] %v298
    %331 = vst [vmem:[#allocation2 + $0xe0] sm:$0xff] %v178
    %332 = vst [vmem:[#allocation2 + $0xe8] sm:$0xff] %v219
    %333 = vst [vmem:[#allocation2 + $0xf0] sm:$0xff] %v260
    %334 = vst [vmem:[#allocation2 + $0xf8] sm:$0xff] %v301
    %v335 = vld [vmem:[#allocation2] sm:$0xff]
    %v336 = vld [vmem:[#allocation2 + $0x8] sm:$0xff]
    %v337 = vld [vmem:[#allocation2 + $0x10] sm:$0xff]
    %v338 = vld [vmem:[#allocation2 + $0x18] sm:$0xff]
    %v339 = vld [vmem:[#allocation6] sm:$0xff]
    %v340 = vld [vmem:[#allocation6 + $0x8] sm:$0xff]
    %v341 = vld [vmem:[#allocation6 + $0x10] sm:$0xff]
    %v342 = vld [vmem:[#allocation6 + $0x18] sm:$0xff]
    %v343 = vld [vmem:[#allocation6 + $0x20] sm:$0xff]
    %v344 = vld [vmem:[#allocation6 + $0x28] sm:$0xff]
    %v345 = vld [vmem:[#allocation6 + $0x30] sm:$0xff]
    %v346 = vld [vmem:[#allocation6 + $0x38] sm:$0xff]
    %v347 = vld [vmem:[#allocation6 + $0x40] sm:$0xff]
    %v348 = vld [vmem:[#allocation6 + $0x48] sm:$0xff]
    %v349 = vld [vmem:[#allocation6 + $0x50] sm:$0xff]
    %v350 = vld [vmem:[#allocation6 + $0x58] sm:$0xff]
    %v351 = vld [vmem:[#allocation6 + $0x60] sm:$0xff]
    %v352 = vld [vmem:[#allocation6 + $0x68] sm:$0xff]
    %v353 = vld [vmem:[#allocation6 + $0x70] sm:$0xff]
    %v354 = vld [vmem:[#allocation6 + $0x78] sm:$0xff]
    %v355 = vld [vmem:[#allocation6 + $0x80] sm:$0xff]
    %v356 = vld [vmem:[#allocation6 + $0x88] sm:$0xff]
    %v357 = vld [vmem:[#allocation6 + $0x90] sm:$0xff]
    %v358 = vld [vmem:[#allocation6 + $0x98] sm:$0xff]
    %v359 = vld [vmem:[#allocation6 + $0xa0] sm:$0xff]
    %v360 = vld [vmem:[#allocation6 + $0xa8] sm:$0xff]
    %v361 = vld [vmem:[#allocation6 + $0xb0] sm:$0xff]
    %v362 = vld [vmem:[#allocation6 + $0xb8] sm:$0xff]
    %v363 = vld [vmem:[#allocation6 + $0xc0] sm:$0xff]
    %v364 = vld [vmem:[#allocation6 + $0xc8] sm:$0xff]
    %v365 = vld [vmem:[#allocation6 + $0xd0] sm:$0xff]
    %v366 = vld [vmem:[#allocation6 + $0xd8] sm:$0xff]
    %v367 = vld [vmem:[#allocation6 + $0xe0] sm:$0xff]
    %v368 = vld [vmem:[#allocation6 + $0xe8] sm:$0xff]
    %v369 = vld [vmem:[#allocation6 + $0xf0] sm:$0xff]
    %v370 = vld [vmem:[#allocation6 + $0xf8] sm:$0xff]
    %v371 = vld [vmem:[#allocation6 + $0x100] sm:$0xff]
    %v372 = vld [vmem:[#allocation6 + $0x108] sm:$0xff]
    %v373 = vld [vmem:[#allocation6 + $0x110] sm:$0xff]
    %v374 = vld [vmem:[#allocation6 + $0x118] sm:$0xff]
    %v375 = vld [vmem:[#allocation6 + $0x120] sm:$0xff]
    %v376 = vld [vmem:[#allocation6 + $0x128] sm:$0xff]
    %v377 = vld [vmem:[#allocation6 + $0x130] sm:$0xff]
    %v378 = vld [vmem:[#allocation6 + $0x138] sm:$0xff]
    %v379 = vld [vmem:[#allocation6 + $0x140] sm:$0xff]
    %v380 = vld [vmem:[#allocation6 + $0x148] sm:$0xff]
    %v381 = vld [vmem:[#allocation6 + $0x150] sm:$0xff]
    %v382 = vld [vmem:[#allocation6 + $0x158] sm:$0xff]
    %v383 = vld [vmem:[#allocation6 + $0x160] sm:$0xff]
    %v384 = vld [vmem:[#allocation6 + $0x168] sm:$0xff]
    %v385 = vld [vmem:[#allocation6 + $0x170] sm:$0xff]
    %v386 = vld [vmem:[#allocation6 + $0x178] sm:$0xff]
    %v387 = vld [vmem:[#allocation6 + $0x180] sm:$0xff]
    %v388 = vld [vmem:[#allocation6 + $0x188] sm:$0xff]
    %v389 = vld [vmem:[#allocation6 + $0x190] sm:$0xff]
    %v390 = vld [vmem:[#allocation6 + $0x198] sm:$0xff]
    %v391 = vld [vmem:[#allocation6 + $0x1a0] sm:$0xff]
    %v392 = vld [vmem:[#allocation6 + $0x1a8] sm:$0xff]
    %v393 = vld [vmem:[#allocation6 + $0x1b0] sm:$0xff]
    %v394 = vld [vmem:[#allocation6 + $0x1b8] sm:$0xff]
    %v395 = vld [vmem:[#allocation6 + $0x1c0] sm:$0xff]
    %v396 = vld [vmem:[#allocation6 + $0x1c8] sm:$0xff]
    %v397 = vld [vmem:[#allocation6 + $0x1d0] sm:$0xff]
    %v398 = vld [vmem:[#allocation6 + $0x1d8] sm:$0xff]
    %v399 = vld [vmem:[#allocation6 + $0x1e0] sm:$0xff]
    %v400 = vld [vmem:[#allocation6 + $0x1e8] sm:$0xff]
    %v401 = vld [vmem:[#allocation6 + $0x1f0] sm:$0xff]
    %v402 = vld [vmem:[#allocation6 + $0x1f8] sm:$0xff]
    %403 = vmatpush.msra.mxu0 %v399
    %404 = vmatpush.msra.mxu0 %v395
    %405 = vmatpush.msra.mxu0 %v391
    %406 = vmatpush.msra.mxu0 %v387
    %407 = vmatpush.msra.mxu0 %v383
    %408 = vmatpush.msra.mxu0 %v379
    %409 = vmatpush.msra.mxu0 %v375
    %410 = vmatpush.msra.mxu0 %v371
    %411 = vmatpush.msra.mxu0 %v367
    %412 = vmatpush.msra.mxu0 %v363
    %413 = vmatpush.msra.mxu0 %v359
    %414 = vmatpush.msra.mxu0 %v355
    %415 = vmatpush.msra.mxu0 %v351
    %416 = vmatpush.msra.mxu0 %v347
    %417 = vmatpush.msra.mxu0 %v343
    %418 = vmatpush.msra.mxu0 %v339
    %419 = vmatmul.f32.gmra.mxu0 0.0
    %v420 = vpop.f32.mrf.mxu0
    %v421 = vadd.f32 0.0, %v420
    %422 = vdwg.mxu0
    %423 = vmatpush.msra.mxu0 %v400
    %424 = vmatpush.msra.mxu0 %v396
    %425 = vmatpush.msra.mxu0 %v392
    %426 = vmatpush.msra.mxu0 %v388
    %427 = vmatpush.msra.mxu0 %v384
    %428 = vmatpush.msra.mxu0 %v380
    %429 = vmatpush.msra.mxu0 %v376
    %430 = vmatpush.msra.mxu0 %v372
    %431 = vmatpush.msra.mxu0 %v368
    %432 = vmatpush.msra.mxu0 %v364
    %433 = vmatpush.msra.mxu0 %v360
    %434 = vmatpush.msra.mxu0 %v356
    %435 = vmatpush.msra.mxu0 %v352
    %436 = vmatpush.msra.mxu0 %v348
    %437 = vmatpush.msra.mxu0 %v344
    %438 = vmatpush.msra.mxu0 %v340
    %439 = vmatmul.f32.gmra.mxu0 0.0
    %v440 = vpop.f32.mrf.mxu0
    %v441 = vadd.f32 0.0, %v440
    %442 = vdwg.mxu0
    %443 = vmatpush.msra.mxu0 %v401
    %444 = vmatpush.msra.mxu0 %v397
    %445 = vmatpush.msra.mxu0 %v393
    %446 = vmatpush.msra.mxu0 %v389
    %447 = vmatpush.msra.mxu0 %v385
    %448 = vmatpush.msra.mxu0 %v381
    %449 = vmatpush.msra.mxu0 %v377
    %450 = vmatpush.msra.mxu0 %v373
    %451 = vmatpush.msra.mxu0 %v369
    %452 = vmatpush.msra.mxu0 %v365
    %453 = vmatpush.msra.mxu0 %v361
    %454 = vmatpush.msra.mxu0 %v357
    %455 = vmatpush.msra.mxu0 %v353
    %456 = vmatpush.msra.mxu0 %v349
    %457 = vmatpush.msra.mxu0 %v345
    %458 = vmatpush.msra.mxu0 %v341
    %459 = vmatmul.f32.gmra.mxu0 0.0
    %v460 = vpop.f32.mrf.mxu0
    %v461 = vadd.f32 0.0, %v460
    %462 = vdwg.mxu0
    %463 = vmatpush.msra.mxu0 %v402
    %464 = vmatpush.msra.mxu0 %v398
    %465 = vmatpush.msra.mxu0 %v394
    %466 = vmatpush.msra.mxu0 %v390
    %467 = vmatpush.msra.mxu0 %v386
    %468 = vmatpush.msra.mxu0 %v382
    %469 = vmatpush.msra.mxu0 %v378
    %470 = vmatpush.msra.mxu0 %v374
    %471 = vmatpush.msra.mxu0 %v370
    %472 = vmatpush.msra.mxu0 %v366
    %473 = vmatpush.msra.mxu0 %v362
    %474 = vmatpush.msra.mxu0 %v358
    %475 = vmatpush.msra.mxu0 %v354
    %476 = vmatpush.msra.mxu0 %v350
    %477 = vmatpush.msra.mxu0 %v346
    %478 = vmatpush.msra.mxu0 %v342
    %479 = vmatmul.f32.gmra.mxu0 0.0
    %v480 = vpop.f32.mrf.mxu0
    %v481 = vadd.f32 0.0, %v480
    %482 = vdwg.mxu0
    %v483 = vadd.f32 %v335, %v421
    %v484 = vadd.f32 %v336, %v441
    %v485 = vadd.f32 %v337, %v461
    %v486 = vadd.f32 %v338, %v481
    %v487 = vxor.u32 %v483, 2147483648
    %v488 = vmul.f32 %v487, 1.442695
    %v489 = vpow.pop %v488
    %v490 = vadd.f32 %v489, 1.0
    %v491 = vrcp.pop %v490
    %v492 = vmul.f32 %v490, %v491
    %v493 = vsub.f32 1.0, %v492
    %v494 = vmul.f32 %v491, %v493
    %v495 = vadd.f32 %v491, %v494
    %vm496 = vweird.f32 %v490
    %vm497 = vweird.f32 %v491
    %vm498 = vmor %vm496, %vm497
    %v499 = vsel %vm498, %v491, %v495
    %v500 = vand.u32 2147483647, %v490
    %vm501 = vcmp.eq.f32.partialorder %v500, 8.507059e+37
    %v502 = vand.u32 %v490, 2147483648
    %v503 = vor.u32 1.1754944e-38, %v502
    %v504 = vsel %vm501, %v503, %v499
    %v505 = vmul.f32 1.0, %v504
    %v506 = vxor.u32 %v484, 2147483648
    %v507 = vmul.f32 %v506, 1.442695
    %v508 = vpow.pop %v507
    %v509 = vadd.f32 %v508, 1.0
    %v510 = vrcp.pop %v509
    %v511 = vmul.f32 %v509, %v510
    %v512 = vsub.f32 1.0, %v511
    %v513 = vmul.f32 %v510, %v512
    %v514 = vadd.f32 %v510, %v513
    %vm515 = vweird.f32 %v509
    %vm516 = vweird.f32 %v510
    %vm517 = vmor %vm515, %vm516
    %v518 = vsel %vm517, %v510, %v514
    %v519 = vand.u32 2147483647, %v509
    %vm520 = vcmp.eq.f32.partialorder %v519, 8.507059e+37
    %v521 = vand.u32 %v509, 2147483648
    %v522 = vor.u32 1.1754944e-38, %v521
    %v523 = vsel %vm520, %v522, %v518
    %v524 = vmul.f32 1.0, %v523
    %v525 = vtanh.pop %v485
    %v526 = vxor.u32 %v486, 2147483648
    %v527 = vmul.f32 %v526, 1.442695
    %v528 = vpow.pop %v527
    %v529 = vadd.f32 %v528, 1.0
    %v530 = vrcp.pop %v529
    %v531 = vmul.f32 %v529, %v530
    %v532 = vsub.f32 1.0, %v531
    %v533 = vmul.f32 %v530, %v532
    %v534 = vadd.f32 %v530, %v533
    %vm535 = vweird.f32 %v529
    %vm536 = vweird.f32 %v530
    %vm537 = vmor %vm535, %vm536
    %v538 = vsel %vm537, %v530, %v534
    %v539 = vand.u32 2147483647, %v529
    %vm540 = vcmp.eq.f32.partialorder %v539, 8.507059e+37
    %v541 = vand.u32 %v529, 2147483648
    %v542 = vor.u32 1.1754944e-38, %v541
    %v543 = vsel %vm540, %v542, %v538
    %v544 = vmul.f32 1.0, %v543
    %v545 = vmul.f32 %v524, 0.0
    %v546 = vmul.f32 %v505, %v525
    %v547 = vadd.f32 %v545, %v546
    %v548 = vtanh.pop %v547
    %v549 = vmul.f32 %v544, %v548
    %v550 = vld [vmem:[#allocation2 + $0x20] sm:$0xff]
    %v551 = vld [vmem:[#allocation2 + $0x28] sm:$0xff]
    %v552 = vld [vmem:[#allocation2 + $0x30] sm:$0xff]
    %v553 = vld [vmem:[#allocation2 + $0x38] sm:$0xff]
    %554 = vmatpush.msra.mxu0 %v399
    %555 = vmatpush.msra.mxu0 %v395
    %556 = vmatpush.msra.mxu0 %v391
    %557 = vmatpush.msra.mxu0 %v387
    %558 = vmatpush.msra.mxu0 %v383
    %559 = vmatpush.msra.mxu0 %v379
    %560 = vmatpush.msra.mxu0 %v375
    %561 = vmatpush.msra.mxu0 %v371
    %562 = vmatpush.msra.mxu0 %v367
    %563 = vmatpush.msra.mxu0 %v363
    %564 = vmatpush.msra.mxu0 %v359
    %565 = vmatpush.msra.mxu0 %v355
    %566 = vmatpush.msra.mxu0 %v351
    %567 = vmatpush.msra.mxu0 %v347
    %568 = vmatpush.msra.mxu0 %v343
    %569 = vmatpush.msra.mxu0 %v339
    %570 = vmatmul.f32.gmra.mxu0 %v549
    %v571 = vpop.f32.mrf.mxu0
    %v572 = vadd.f32 0.0, %v571
    %573 = vdwg.mxu0
    %574 = vmatpush.msra.mxu0 %v400
    %575 = vmatpush.msra.mxu0 %v396
    %576 = vmatpush.msra.mxu0 %v392
    %577 = vmatpush.msra.mxu0 %v388
    %578 = vmatpush.msra.mxu0 %v384
    %579 = vmatpush.msra.mxu0 %v380
    %580 = vmatpush.msra.mxu0 %v376
    %581 = vmatpush.msra.mxu0 %v372
    %582 = vmatpush.msra.mxu0 %v368
    %583 = vmatpush.msra.mxu0 %v364
    %584 = vmatpush.msra.mxu0 %v360
    %585 = vmatpush.msra.mxu0 %v356
    %586 = vmatpush.msra.mxu0 %v352
    %587 = vmatpush.msra.mxu0 %v348
    %588 = vmatpush.msra.mxu0 %v344
    %589 = vmatpush.msra.mxu0 %v340
    %590 = vmatmul.f32.gmra.mxu0 %v549
    %v591 = vpop.f32.mrf.mxu0
    %v592 = vadd.f32 0.0, %v591
    %593 = vdwg.mxu0
    %594 = vmatpush.msra.mxu0 %v401
    %595 = vmatpush.msra.mxu0 %v397
    %596 = vmatpush.msra.mxu0 %v393
    %597 = vmatpush.msra.mxu0 %v389
    %598 = vmatpush.msra.mxu0 %v385
    %599 = vmatpush.msra.mxu0 %v381
    %600 = vmatpush.msra.mxu0 %v377
    %601 = vmatpush.msra.mxu0 %v373
    %602 = vmatpush.msra.mxu0 %v369
    %603 = vmatpush.msra.mxu0 %v365
    %604 = vmatpush.msra.mxu0 %v361
    %605 = vmatpush.msra.mxu0 %v357
    %606 = vmatpush.msra.mxu0 %v353
    %607 = vmatpush.msra.mxu0 %v349
    %608 = vmatpush.msra.mxu0 %v345
    %609 = vmatpush.msra.mxu0 %v341
    %610 = vmatmul.f32.gmra.mxu0 %v549
    %v611 = vpop.f32.mrf.mxu0
    %v612 = vadd.f32 0.0, %v611
    %613 = vdwg.mxu0
    %614 = vmatpush.msra.mxu0 %v402
    %615 = vmatpush.msra.mxu0 %v398
    %616 = vmatpush.msra.mxu0 %v394
    %617 = vmatpush.msra.mxu0 %v390
    %618 = vmatpush.msra.mxu0 %v386
    %619 = vmatpush.msra.mxu0 %v382
    %620 = vmatpush.msra.mxu0 %v378
    %621 = vmatpush.msra.mxu0 %v374
    %622 = vmatpush.msra.mxu0 %v370
    %623 = vmatpush.msra.mxu0 %v366
    %624 = vmatpush.msra.mxu0 %v362
    %625 = vmatpush.msra.mxu0 %v358
    %626 = vmatpush.msra.mxu0 %v354
    %627 = vmatpush.msra.mxu0 %v350
    %628 = vmatpush.msra.mxu0 %v346
    %629 = vmatpush.msra.mxu0 %v342
    %630 = vmatmul.f32.gmra.mxu0 %v549
    %v631 = vpop.f32.mrf.mxu0
    %v632 = vadd.f32 0.0, %v631
    %633 = vdwg.mxu0
    %v634 = vadd.f32 %v550, %v572
    %v635 = vadd.f32 %v551, %v592
    %v636 = vadd.f32 %v552, %v612
    %v637 = vadd.f32 %v553, %v632
    %v638 = vxor.u32 %v634, 2147483648
    %v639 = vmul.f32 %v638, 1.442695
    %v640 = vpow.pop %v639
    %v641 = vadd.f32 %v640, 1.0
    %v642 = vrcp.pop %v641
    %v643 = vmul.f32 %v641, %v642
    %v644 = vsub.f32 1.0, %v643
    %v645 = vmul.f32 %v642, %v644
    %v646 = vadd.f32 %v642, %v645
    %vm647 = vweird.f32 %v641
    %vm648 = vweird.f32 %v642
    %vm649 = vmor %vm647, %vm648
    %v650 = vsel %vm649, %v642, %v646
    %v651 = vand.u32 2147483647, %v641
    %vm652 = vcmp.eq.f32.partialorder %v651, 8.507059e+37
    %v653 = vand.u32 %v641, 2147483648
    %v654 = vor.u32 1.1754944e-38, %v653
    %v655 = vsel %vm652, %v654, %v650
    %v656 = vmul.f32 1.0, %v655
    %v657 = vxor.u32 %v635, 2147483648
    %v658 = vmul.f32 %v657, 1.442695
    %v659 = vpow.pop %v658
    %v660 = vadd.f32 %v659, 1.0
    %v661 = vrcp.pop %v660
    %v662 = vmul.f32 %v660, %v661
    %v663 = vsub.f32 1.0, %v662
    %v664 = vmul.f32 %v661, %v663
    %v665 = vadd.f32 %v661, %v664
    %vm666 = vweird.f32 %v660
    %vm667 = vweird.f32 %v661
    %vm668 = vmor %vm666, %vm667
    %v669 = vsel %vm668, %v661, %v665
    %v670 = vand.u32 2147483647, %v660
    %vm671 = vcmp.eq.f32.partialorder %v670, 8.507059e+37
    %v672 = vand.u32 %v660, 2147483648
    %v673 = vor.u32 1.1754944e-38, %v672
    %v674 = vsel %vm671, %v673, %v669
    %v675 = vmul.f32 1.0, %v674
    %v676 = vtanh.pop %v636
    %v677 = vxor.u32 %v637, 2147483648
    %v678 = vmul.f32 %v677, 1.442695
    %v679 = vpow.pop %v678
    %v680 = vadd.f32 %v679, 1.0
    %v681 = vrcp.pop %v680
    %v682 = vmul.f32 %v680, %v681
    %v683 = vsub.f32 1.0, %v682
    %v684 = vmul.f32 %v681, %v683
    %v685 = vadd.f32 %v681, %v684
    %vm686 = vweird.f32 %v680
    %vm687 = vweird.f32 %v681
    %vm688 = vmor %vm686, %vm687
    %v689 = vsel %vm688, %v681, %v685
    %v690 = vand.u32 2147483647, %v680
    %vm691 = vcmp.eq.f32.partialorder %v690, 8.507059e+37
    %v692 = vand.u32 %v680, 2147483648
    %v693 = vor.u32 1.1754944e-38, %v692
    %v694 = vsel %vm691, %v693, %v689
    %v695 = vmul.f32 1.0, %v694
    %v696 = vmul.f32 %v675, %v547
    %v697 = vmul.f32 %v656, %v676
    %v698 = vadd.f32 %v696, %v697
    %v699 = vtanh.pop %v698
    %v700 = vmul.f32 %v695, %v699
    %v701 = vld [vmem:[#allocation2 + $0x40] sm:$0xff]
    %v702 = vld [vmem:[#allocation2 + $0x48] sm:$0xff]
    %v703 = vld [vmem:[#allocation2 + $0x50] sm:$0xff]
    %v704 = vld [vmem:[#allocation2 + $0x58] sm:$0xff]
    %705 = vmatpush.msra.mxu0 %v399
    %706 = vmatpush.msra.mxu0 %v395
    %707 = vmatpush.msra.mxu0 %v391
    %708 = vmatpush.msra.mxu0 %v387
    %709 = vmatpush.msra.mxu0 %v383
    %710 = vmatpush.msra.mxu0 %v379
    %711 = vmatpush.msra.mxu0 %v375
    %712 = vmatpush.msra.mxu0 %v371
    %713 = vmatpush.msra.mxu0 %v367
    %714 = vmatpush.msra.mxu0 %v363
    %715 = vmatpush.msra.mxu0 %v359
    %716 = vmatpush.msra.mxu0 %v355
    %717 = vmatpush.msra.mxu0 %v351
    %718 = vmatpush.msra.mxu0 %v347
    %719 = vmatpush.msra.mxu0 %v343
    %720 = vmatpush.msra.mxu0 %v339
    %721 = vmatmul.f32.gmra.mxu0 %v700
    %v722 = vpop.f32.mrf.mxu0
    %v723 = vadd.f32 0.0, %v722
    %724 = vdwg.mxu0
    %725 = vmatpush.msra.mxu0 %v400
    %726 = vmatpush.msra.mxu0 %v396
    %727 = vmatpush.msra.mxu0 %v392
    %728 = vmatpush.msra.mxu0 %v388
    %729 = vmatpush.msra.mxu0 %v384
    %730 = vmatpush.msra.mxu0 %v380
    %731 = vmatpush.msra.mxu0 %v376
    %732 = vmatpush.msra.mxu0 %v372
    %733 = vmatpush.msra.mxu0 %v368
    %734 = vmatpush.msra.mxu0 %v364
    %735 = vmatpush.msra.mxu0 %v360
    %736 = vmatpush.msra.mxu0 %v356
    %737 = vmatpush.msra.mxu0 %v352
    %738 = vmatpush.msra.mxu0 %v348
    %739 = vmatpush.msra.mxu0 %v344
    %740 = vmatpush.msra.mxu0 %v340
    %741 = vmatmul.f32.gmra.mxu0 %v700
    %v742 = vpop.f32.mrf.mxu0
    %v743 = vadd.f32 0.0, %v742
    %744 = vdwg.mxu0
    %745 = vmatpush.msra.mxu0 %v401
    %746 = vmatpush.msra.mxu0 %v397
    %747 = vmatpush.msra.mxu0 %v393
    %748 = vmatpush.msra.mxu0 %v389
    %749 = vmatpush.msra.mxu0 %v385
    %750 = vmatpush.msra.mxu0 %v381
    %751 = vmatpush.msra.mxu0 %v377
    %752 = vmatpush.msra.mxu0 %v373
    %753 = vmatpush.msra.mxu0 %v369
    %754 = vmatpush.msra.mxu0 %v365
    %755 = vmatpush.msra.mxu0 %v361
    %756 = vmatpush.msra.mxu0 %v357
    %757 = vmatpush.msra.mxu0 %v353
    %758 = vmatpush.msra.mxu0 %v349
    %759 = vmatpush.msra.mxu0 %v345
    %760 = vmatpush.msra.mxu0 %v341
    %761 = vmatmul.f32.gmra.mxu0 %v700
    %v762 = vpop.f32.mrf.mxu0
    %v763 = vadd.f32 0.0, %v762
    %764 = vdwg.mxu0
    %765 = vmatpush.msra.mxu0 %v402
    %766 = vmatpush.msra.mxu0 %v398
    %767 = vmatpush.msra.mxu0 %v394
    %768 = vmatpush.msra.mxu0 %v390
    %769 = vmatpush.msra.mxu0 %v386
    %770 = vmatpush.msra.mxu0 %v382
    %771 = vmatpush.msra.mxu0 %v378
    %772 = vmatpush.msra.mxu0 %v374
    %773 = vmatpush.msra.mxu0 %v370
    %774 = vmatpush.msra.mxu0 %v366
    %775 = vmatpush.msra.mxu0 %v362
    %776 = vmatpush.msra.mxu0 %v358
    %777 = vmatpush.msra.mxu0 %v354
    %778 = vmatpush.msra.mxu0 %v350
    %779 = vmatpush.msra.mxu0 %v346
    %780 = vmatpush.msra.mxu0 %v342
    %781 = vmatmul.f32.gmra.mxu0 %v700
    %v782 = vpop.f32.mrf.mxu0
    %v783 = vadd.f32 0.0, %v782
    %784 = vdwg.mxu0
    %v785 = vadd.f32 %v701, %v723
    %v786 = vadd.f32 %v702, %v743
    %v787 = vadd.f32 %v703, %v763
    %v788 = vadd.f32 %v704, %v783
    %v789 = vxor.u32 %v785, 2147483648
    %v790 = vmul.f32 %v789, 1.442695
    %v791 = vpow.pop %v790
    %v792 = vadd.f32 %v791, 1.0
    %v793 = vrcp.pop %v792
    %v794 = vmul.f32 %v792, %v793
    %v795 = vsub.f32 1.0, %v794
    %v796 = vmul.f32 %v793, %v795
    %v797 = vadd.f32 %v793, %v796
    %vm798 = vweird.f32 %v792
    %vm799 = vweird.f32 %v793
    %vm800 = vmor %vm798, %vm799
    %v801 = vsel %vm800, %v793, %v797
    %v802 = vand.u32 2147483647, %v792
    %vm803 = vcmp.eq.f32.partialorder %v802, 8.507059e+37
    %v804 = vand.u32 %v792, 2147483648
    %v805 = vor.u32 1.1754944e-38, %v804
    %v806 = vsel %vm803, %v805, %v801
    %v807 = vmul.f32 1.0, %v806
    %v808 = vxor.u32 %v786, 2147483648
    %v809 = vmul.f32 %v808, 1.442695
    %v810 = vpow.pop %v809
    %v811 = vadd.f32 %v810, 1.0
    %v812 = vrcp.pop %v811
    %v813 = vmul.f32 %v811, %v812
    %v814 = vsub.f32 1.0, %v813
    %v815 = vmul.f32 %v812, %v814
    %v816 = vadd.f32 %v812, %v815
    %vm817 = vweird.f32 %v811
    %vm818 = vweird.f32 %v812
    %vm819 = vmor %vm817, %vm818
    %v820 = vsel %vm819, %v812, %v816
    %v821 = vand.u32 2147483647, %v811
    %vm822 = vcmp.eq.f32.partialorder %v821, 8.507059e+37
    %v823 = vand.u32 %v811, 2147483648
    %v824 = vor.u32 1.1754944e-38, %v823
    %v825 = vsel %vm822, %v824, %v820
    %v826 = vmul.f32 1.0, %v825
    %v827 = vtanh.pop %v787
    %v828 = vxor.u32 %v788, 2147483648
    %v829 = vmul.f32 %v828, 1.442695
    %v830 = vpow.pop %v829
    %v831 = vadd.f32 %v830, 1.0
    %v832 = vrcp.pop %v831
    %v833 = vmul.f32 %v831, %v832
    %v834 = vsub.f32 1.0, %v833
    %v835 = vmul.f32 %v832, %v834
    %v836 = vadd.f32 %v832, %v835
    %vm837 = vweird.f32 %v831
    %vm838 = vweird.f32 %v832
    %vm839 = vmor %vm837, %vm838
    %v840 = vsel %vm839, %v832, %v836
    %v841 = vand.u32 2147483647, %v831
    %vm842 = vcmp.eq.f32.partialorder %v841, 8.507059e+37
    %v843 = vand.u32 %v831, 2147483648
    %v844 = vor.u32 1.1754944e-38, %v843
    %v845 = vsel %vm842, %v844, %v840
    %v846 = vmul.f32 1.0, %v845
    %v847 = vmul.f32 %v826, %v698
    %v848 = vmul.f32 %v807, %v827
    %v849 = vadd.f32 %v847, %v848
    %v850 = vtanh.pop %v849
    %v851 = vmul.f32 %v846, %v850
    %v852 = vld [vmem:[#allocation2 + $0x60] sm:$0xff]
    %v853 = vld [vmem:[#allocation2 + $0x68] sm:$0xff]
    %v854 = vld [vmem:[#allocation2 + $0x70] sm:$0xff]
    %v855 = vld [vmem:[#allocation2 + $0x78] sm:$0xff]
    %856 = vmatpush.msra.mxu0 %v399
    %857 = vmatpush.msra.mxu0 %v395
    %858 = vmatpush.msra.mxu0 %v391
    %859 = vmatpush.msra.mxu0 %v387
    %860 = vmatpush.msra.mxu0 %v383
    %861 = vmatpush.msra.mxu0 %v379
    %862 = vmatpush.msra.mxu0 %v375
    %863 = vmatpush.msra.mxu0 %v371
    %864 = vmatpush.msra.mxu0 %v367
    %865 = vmatpush.msra.mxu0 %v363
    %866 = vmatpush.msra.mxu0 %v359
    %867 = vmatpush.msra.mxu0 %v355
    %868 = vmatpush.msra.mxu0 %v351
    %869 = vmatpush.msra.mxu0 %v347
    %870 = vmatpush.msra.mxu0 %v343
    %871 = vmatpush.msra.mxu0 %v339
    %872 = vmatmul.f32.gmra.mxu0 %v851
    %v873 = vpop.f32.mrf.mxu0
    %v874 = vadd.f32 0.0, %v873
    %875 = vdwg.mxu0
    %876 = vmatpush.msra.mxu0 %v400
    %877 = vmatpush.msra.mxu0 %v396
    %878 = vmatpush.msra.mxu0 %v392
    %879 = vmatpush.msra.mxu0 %v388
    %880 = vmatpush.msra.mxu0 %v384
    %881 = vmatpush.msra.mxu0 %v380
    %882 = vmatpush.msra.mxu0 %v376
    %883 = vmatpush.msra.mxu0 %v372
    %884 = vmatpush.msra.mxu0 %v368
    %885 = vmatpush.msra.mxu0 %v364
    %886 = vmatpush.msra.mxu0 %v360
    %887 = vmatpush.msra.mxu0 %v356
    %888 = vmatpush.msra.mxu0 %v352
    %889 = vmatpush.msra.mxu0 %v348
    %890 = vmatpush.msra.mxu0 %v344
    %891 = vmatpush.msra.mxu0 %v340
    %892 = vmatmul.f32.gmra.mxu0 %v851
    %v893 = vpop.f32.mrf.mxu0
    %v894 = vadd.f32 0.0, %v893
    %895 = vdwg.mxu0
    %896 = vmatpush.msra.mxu0 %v401
    %897 = vmatpush.msra.mxu0 %v397
    %898 = vmatpush.msra.mxu0 %v393
    %899 = vmatpush.msra.mxu0 %v389
    %900 = vmatpush.msra.mxu0 %v385
    %901 = vmatpush.msra.mxu0 %v381
    %902 = vmatpush.msra.mxu0 %v377
    %903 = vmatpush.msra.mxu0 %v373
    %904 = vmatpush.msra.mxu0 %v369
    %905 = vmatpush.msra.mxu0 %v365
    %906 = vmatpush.msra.mxu0 %v361
    %907 = vmatpush.msra.mxu0 %v357
    %908 = vmatpush.msra.mxu0 %v353
    %909 = vmatpush.msra.mxu0 %v349
    %910 = vmatpush.msra.mxu0 %v345
    %911 = vmatpush.msra.mxu0 %v341
    %912 = vmatmul.f32.gmra.mxu0 %v851
    %v913 = vpop.f32.mrf.mxu0
    %v914 = vadd.f32 0.0, %v913
    %915 = vdwg.mxu0
    %916 = vmatpush.msra.mxu0 %v402
    %917 = vmatpush.msra.mxu0 %v398
    %918 = vmatpush.msra.mxu0 %v394
    %919 = vmatpush.msra.mxu0 %v390
    %920 = vmatpush.msra.mxu0 %v386
    %921 = vmatpush.msra.mxu0 %v382
    %922 = vmatpush.msra.mxu0 %v378
    %923 = vmatpush.msra.mxu0 %v374
    %924 = vmatpush.msra.mxu0 %v370
    %925 = vmatpush.msra.mxu0 %v366
    %926 = vmatpush.msra.mxu0 %v362
    %927 = vmatpush.msra.mxu0 %v358
    %928 = vmatpush.msra.mxu0 %v354
    %929 = vmatpush.msra.mxu0 %v350
    %930 = vmatpush.msra.mxu0 %v346
    %931 = vmatpush.msra.mxu0 %v342
    %932 = vmatmul.f32.gmra.mxu0 %v851
    %v933 = vpop.f32.mrf.mxu0
    %v934 = vadd.f32 0.0, %v933
    %935 = vdwg.mxu0
    %v936 = vadd.f32 %v852, %v874
    %v937 = vadd.f32 %v853, %v894
    %v938 = vadd.f32 %v854, %v914
    %v939 = vadd.f32 %v855, %v934
    %v940 = vxor.u32 %v936, 2147483648
    %v941 = vmul.f32 %v940, 1.442695
    %v942 = vpow.pop %v941
    %v943 = vadd.f32 %v942, 1.0
    %v944 = vrcp.pop %v943
    %v945 = vmul.f32 %v943, %v944
    %v946 = vsub.f32 1.0, %v945
    %v947 = vmul.f32 %v944, %v946
    %v948 = vadd.f32 %v944, %v947
    %vm949 = vweird.f32 %v943
    %vm950 = vweird.f32 %v944
    %vm951 = vmor %vm949, %vm950
    %v952 = vsel %vm951, %v944, %v948
    %v953 = vand.u32 2147483647, %v943
    %vm954 = vcmp.eq.f32.partialorder %v953, 8.507059e+37
    %v955 = vand.u32 %v943, 2147483648
    %v956 = vor.u32 1.1754944e-38, %v955
    %v957 = vsel %vm954, %v956, %v952
    %v958 = vmul.f32 1.0, %v957
    %v959 = vxor.u32 %v937, 2147483648
    %v960 = vmul.f32 %v959, 1.442695
    %v961 = vpow.pop %v960
    %v962 = vadd.f32 %v961, 1.0
    %v963 = vrcp.pop %v962
    %v964 = vmul.f32 %v962, %v963
    %v965 = vsub.f32 1.0, %v964
    %v966 = vmul.f32 %v963, %v965
    %v967 = vadd.f32 %v963, %v966
    %vm968 = vweird.f32 %v962
    %vm969 = vweird.f32 %v963
    %vm970 = vmor %vm968, %vm969
    %v971 = vsel %vm970, %v963, %v967
    %v972 = vand.u32 2147483647, %v962
    %vm973 = vcmp.eq.f32.partialorder %v972, 8.507059e+37
    %v974 = vand.u32 %v962, 2147483648
    %v975 = vor.u32 1.1754944e-38, %v974
    %v976 = vsel %vm973, %v975, %v971
    %v977 = vmul.f32 1.0, %v976
    %v978 = vtanh.pop %v938
    %v979 = vxor.u32 %v939, 2147483648
    %v980 = vmul.f32 %v979, 1.442695
    %v981 = vpow.pop %v980
    %v982 = vadd.f32 %v981, 1.0
    %v983 = vrcp.pop %v982
    %v984 = vmul.f32 %v982, %v983
    %v985 = vsub.f32 1.0, %v984
    %v986 = vmul.f32 %v983, %v985
    %v987 = vadd.f32 %v983, %v986
    %vm988 = vweird.f32 %v982
    %vm989 = vweird.f32 %v983
    %vm990 = vmor %vm988, %vm989
    %v991 = vsel %vm990, %v983, %v987
    %v992 = vand.u32 2147483647, %v982
    %vm993 = vcmp.eq.f32.partialorder %v992, 8.507059e+37
    %v994 = vand.u32 %v982, 2147483648
    %v995 = vor.u32 1.1754944e-38, %v994
    %v996 = vsel %vm993, %v995, %v991
    %v997 = vmul.f32 1.0, %v996
    %v998 = vmul.f32 %v977, %v849
    %v999 = vmul.f32 %v958, %v978
    %v1000 = vadd.f32 %v998, %v999
    %v1001 = vtanh.pop %v1000
    %v1002 = vmul.f32 %v997, %v1001
    %v1003 = vld [vmem:[#allocation2 + $0x80] sm:$0xff]
    %v1004 = vld [vmem:[#allocation2 + $0x88] sm:$0xff]
    %v1005 = vld [vmem:[#allocation2 + $0x90] sm:$0xff]
    %v1006 = vld [vmem:[#allocation2 + $0x98] sm:$0xff]
    %1007 = vmatpush.msra.mxu0 %v399
    %1008 = vmatpush.msra.mxu0 %v395
    %1009 = vmatpush.msra.mxu0 %v391
    %1010 = vmatpush.msra.mxu0 %v387
    %1011 = vmatpush.msra.mxu0 %v383
    %1012 = vmatpush.msra.mxu0 %v379
    %1013 = vmatpush.msra.mxu0 %v375
    %1014 = vmatpush.msra.mxu0 %v371
    %1015 = vmatpush.msra.mxu0 %v367
    %1016 = vmatpush.msra.mxu0 %v363
    %1017 = vmatpush.msra.mxu0 %v359
    %1018 = vmatpush.msra.mxu0 %v355
    %1019 = vmatpush.msra.mxu0 %v351
    %1020 = vmatpush.msra.mxu0 %v347
    %1021 = vmatpush.msra.mxu0 %v343
    %1022 = vmatpush.msra.mxu0 %v339
    %1023 = vmatmul.f32.gmra.mxu0 %v1002
    %v1024 = vpop.f32.mrf.mxu0
    %v1025 = vadd.f32 0.0, %v1024
    %1026 = vdwg.mxu0
    %1027 = vmatpush.msra.mxu0 %v400
    %1028 = vmatpush.msra.mxu0 %v396
    %1029 = vmatpush.msra.mxu0 %v392
    %1030 = vmatpush.msra.mxu0 %v388
    %1031 = vmatpush.msra.mxu0 %v384
    %1032 = vmatpush.msra.mxu0 %v380
    %1033 = vmatpush.msra.mxu0 %v376
    %1034 = vmatpush.msra.mxu0 %v372
    %1035 = vmatpush.msra.mxu0 %v368
    %1036 = vmatpush.msra.mxu0 %v364
    %1037 = vmatpush.msra.mxu0 %v360
    %1038 = vmatpush.msra.mxu0 %v356
    %1039 = vmatpush.msra.mxu0 %v352
    %1040 = vmatpush.msra.mxu0 %v348
    %1041 = vmatpush.msra.mxu0 %v344
    %1042 = vmatpush.msra.mxu0 %v340
    %1043 = vmatmul.f32.gmra.mxu0 %v1002
    %v1044 = vpop.f32.mrf.mxu0
    %v1045 = vadd.f32 0.0, %v1044
    %1046 = vdwg.mxu0
    %1047 = vmatpush.msra.mxu0 %v401
    %1048 = vmatpush.msra.mxu0 %v397
    %1049 = vmatpush.msra.mxu0 %v393
    %1050 = vmatpush.msra.mxu0 %v389
    %1051 = vmatpush.msra.mxu0 %v385
    %1052 = vmatpush.msra.mxu0 %v381
    %1053 = vmatpush.msra.mxu0 %v377
    %1054 = vmatpush.msra.mxu0 %v373
    %1055 = vmatpush.msra.mxu0 %v369
    %1056 = vmatpush.msra.mxu0 %v365
    %1057 = vmatpush.msra.mxu0 %v361
    %1058 = vmatpush.msra.mxu0 %v357
    %1059 = vmatpush.msra.mxu0 %v353
    %1060 = vmatpush.msra.mxu0 %v349
    %1061 = vmatpush.msra.mxu0 %v345
    %1062 = vmatpush.msra.mxu0 %v341
    %1063 = vmatmul.f32.gmra.mxu0 %v1002
    %v1064 = vpop.f32.mrf.mxu0
    %v1065 = vadd.f32 0.0, %v1064
    %1066 = vdwg.mxu0
    %1067 = vmatpush.msra.mxu0 %v402
    %1068 = vmatpush.msra.mxu0 %v398
    %1069 = vmatpush.msra.mxu0 %v394
    %1070 = vmatpush.msra.mxu0 %v390
    %1071 = vmatpush.msra.mxu0 %v386
    %1072 = vmatpush.msra.mxu0 %v382
    %1073 = vmatpush.msra.mxu0 %v378
    %1074 = vmatpush.msra.mxu0 %v374
    %1075 = vmatpush.msra.mxu0 %v370
    %1076 = vmatpush.msra.mxu0 %v366
    %1077 = vmatpush.msra.mxu0 %v362
    %1078 = vmatpush.msra.mxu0 %v358
    %1079 = vmatpush.msra.mxu0 %v354
    %1080 = vmatpush.msra.mxu0 %v350
    %1081 = vmatpush.msra.mxu0 %v346
    %1082 = vmatpush.msra.mxu0 %v342
    %1083 = vmatmul.f32.gmra.mxu0 %v1002
    %v1084 = vpop.f32.mrf.mxu0
    %v1085 = vadd.f32 0.0, %v1084
    %1086 = vdwg.mxu0
    %v1087 = vadd.f32 %v1003, %v1025
    %v1088 = vadd.f32 %v1004, %v1045
    %v1089 = vadd.f32 %v1005, %v1065
    %v1090 = vadd.f32 %v1006, %v1085
    %v1091 = vxor.u32 %v1087, 2147483648
    %v1092 = vmul.f32 %v1091, 1.442695
    %v1093 = vpow.pop %v1092
    %v1094 = vadd.f32 %v1093, 1.0
    %v1095 = vrcp.pop %v1094
    %v1096 = vmul.f32 %v1094, %v1095
    %v1097 = vsub.f32 1.0, %v1096
    %v1098 = vmul.f32 %v1095, %v1097
    %v1099 = vadd.f32 %v1095, %v1098
    %vm1100 = vweird.f32 %v1094
    %vm1101 = vweird.f32 %v1095
    %vm1102 = vmor %vm1100, %vm1101
    %v1103 = vsel %vm1102, %v1095, %v1099
    %v1104 = vand.u32 2147483647, %v1094
    %vm1105 = vcmp.eq.f32.partialorder %v1104, 8.507059e+37
    %v1106 = vand.u32 %v1094, 2147483648
    %v1107 = vor.u32 1.1754944e-38, %v1106
    %v1108 = vsel %vm1105, %v1107, %v1103
    %v1109 = vmul.f32 1.0, %v1108
    %v1110 = vxor.u32 %v1088, 2147483648
    %v1111 = vmul.f32 %v1110, 1.442695
    %v1112 = vpow.pop %v1111
    %v1113 = vadd.f32 %v1112, 1.0
    %v1114 = vrcp.pop %v1113
    %v1115 = vmul.f32 %v1113, %v1114
    %v1116 = vsub.f32 1.0, %v1115
    %v1117 = vmul.f32 %v1114, %v1116
    %v1118 = vadd.f32 %v1114, %v1117
    %vm1119 = vweird.f32 %v1113
    %vm1120 = vweird.f32 %v1114
    %vm1121 = vmor %vm1119, %vm1120
    %v1122 = vsel %vm1121, %v1114, %v1118
    %v1123 = vand.u32 2147483647, %v1113
    %vm1124 = vcmp.eq.f32.partialorder %v1123, 8.507059e+37
    %v1125 = vand.u32 %v1113, 2147483648
    %v1126 = vor.u32 1.1754944e-38, %v1125
    %v1127 = vsel %vm1124, %v1126, %v1122
    %v1128 = vmul.f32 1.0, %v1127
    %v1129 = vtanh.pop %v1089
    %v1130 = vxor.u32 %v1090, 2147483648
    %v1131 = vmul.f32 %v1130, 1.442695
    %v1132 = vpow.pop %v1131
    %v1133 = vadd.f32 %v1132, 1.0
    %v1134 = vrcp.pop %v1133
    %v1135 = vmul.f32 %v1133, %v1134
    %v1136 = vsub.f32 1.0, %v1135
    %v1137 = vmul.f32 %v1134, %v1136
    %v1138 = vadd.f32 %v1134, %v1137
    %vm1139 = vweird.f32 %v1133
    %vm1140 = vweird.f32 %v1134
    %vm1141 = vmor %vm1139, %vm1140
    %v1142 = vsel %vm1141, %v1134, %v1138
    %v1143 = vand.u32 2147483647, %v1133
    %vm1144 = vcmp.eq.f32.partialorder %v1143, 8.507059e+37
    %v1145 = vand.u32 %v1133, 2147483648
    %v1146 = vor.u32 1.1754944e-38, %v1145
    %v1147 = vsel %vm1144, %v1146, %v1142
    %v1148 = vmul.f32 1.0, %v1147
    %v1149 = vmul.f32 %v1128, %v1000
    %v1150 = vmul.f32 %v1109, %v1129
    %v1151 = vadd.f32 %v1149, %v1150
    %v1152 = vtanh.pop %v1151
    %v1153 = vmul.f32 %v1148, %v1152
    %v1154 = vld [vmem:[#allocation2 + $0xa0] sm:$0xff]
    %v1155 = vld [vmem:[#allocation2 + $0xa8] sm:$0xff]
    %v1156 = vld [vmem:[#allocation2 + $0xb0] sm:$0xff]
    %v1157 = vld [vmem:[#allocation2 + $0xb8] sm:$0xff]
    %1158 = vmatpush.msra.mxu0 %v399
    %1159 = vmatpush.msra.mxu0 %v395
    %1160 = vmatpush.msra.mxu0 %v391
    %1161 = vmatpush.msra.mxu0 %v387
    %1162 = vmatpush.msra.mxu0 %v383
    %1163 = vmatpush.msra.mxu0 %v379
    %1164 = vmatpush.msra.mxu0 %v375
    %1165 = vmatpush.msra.mxu0 %v371
    %1166 = vmatpush.msra.mxu0 %v367
    %1167 = vmatpush.msra.mxu0 %v363
    %1168 = vmatpush.msra.mxu0 %v359
    %1169 = vmatpush.msra.mxu0 %v355
    %1170 = vmatpush.msra.mxu0 %v351
    %1171 = vmatpush.msra.mxu0 %v347
    %1172 = vmatpush.msra.mxu0 %v343
    %1173 = vmatpush.msra.mxu0 %v339
    %1174 = vmatmul.f32.gmra.mxu0 %v1153
    %v1175 = vpop.f32.mrf.mxu0
    %v1176 = vadd.f32 0.0, %v1175
    %1177 = vdwg.mxu0
    %1178 = vmatpush.msra.mxu0 %v400
    %1179 = vmatpush.msra.mxu0 %v396
    %1180 = vmatpush.msra.mxu0 %v392
    %1181 = vmatpush.msra.mxu0 %v388
    %1182 = vmatpush.msra.mxu0 %v384
    %1183 = vmatpush.msra.mxu0 %v380
    %1184 = vmatpush.msra.mxu0 %v376
    %1185 = vmatpush.msra.mxu0 %v372
    %1186 = vmatpush.msra.mxu0 %v368
    %1187 = vmatpush.msra.mxu0 %v364
    %1188 = vmatpush.msra.mxu0 %v360
    %1189 = vmatpush.msra.mxu0 %v356
    %1190 = vmatpush.msra.mxu0 %v352
    %1191 = vmatpush.msra.mxu0 %v348
    %1192 = vmatpush.msra.mxu0 %v344
    %1193 = vmatpush.msra.mxu0 %v340
    %1194 = vmatmul.f32.gmra.mxu0 %v1153
    %v1195 = vpop.f32.mrf.mxu0
    %v1196 = vadd.f32 0.0, %v1195
    %1197 = vdwg.mxu0
    %1198 = vmatpush.msra.mxu0 %v401
    %1199 = vmatpush.msra.mxu0 %v397
    %1200 = vmatpush.msra.mxu0 %v393
    %1201 = vmatpush.msra.mxu0 %v389
    %1202 = vmatpush.msra.mxu0 %v385
    %1203 = vmatpush.msra.mxu0 %v381
    %1204 = vmatpush.msra.mxu0 %v377
    %1205 = vmatpush.msra.mxu0 %v373
    %1206 = vmatpush.msra.mxu0 %v369
    %1207 = vmatpush.msra.mxu0 %v365
    %1208 = vmatpush.msra.mxu0 %v361
    %1209 = vmatpush.msra.mxu0 %v357
    %1210 = vmatpush.msra.mxu0 %v353
    %1211 = vmatpush.msra.mxu0 %v349
    %1212 = vmatpush.msra.mxu0 %v345
    %1213 = vmatpush.msra.mxu0 %v341
    %1214 = vmatmul.f32.gmra.mxu0 %v1153
    %v1215 = vpop.f32.mrf.mxu0
    %v1216 = vadd.f32 0.0, %v1215
    %1217 = vdwg.mxu0
    %1218 = vmatpush.msra.mxu0 %v402
    %1219 = vmatpush.msra.mxu0 %v398
    %1220 = vmatpush.msra.mxu0 %v394
    %1221 = vmatpush.msra.mxu0 %v390
    %1222 = vmatpush.msra.mxu0 %v386
    %1223 = vmatpush.msra.mxu0 %v382
    %1224 = vmatpush.msra.mxu0 %v378
    %1225 = vmatpush.msra.mxu0 %v374
    %1226 = vmatpush.msra.mxu0 %v370
    %1227 = vmatpush.msra.mxu0 %v366
    %1228 = vmatpush.msra.mxu0 %v362
    %1229 = vmatpush.msra.mxu0 %v358
    %1230 = vmatpush.msra.mxu0 %v354
    %1231 = vmatpush.msra.mxu0 %v350
    %1232 = vmatpush.msra.mxu0 %v346
    %1233 = vmatpush.msra.mxu0 %v342
    %1234 = vmatmul.f32.gmra.mxu0 %v1153
    %v1235 = vpop.f32.mrf.mxu0
    %v1236 = vadd.f32 0.0, %v1235
    %1237 = vdwg.mxu0
    %v1238 = vadd.f32 %v1154, %v1176
    %v1239 = vadd.f32 %v1155, %v1196
    %v1240 = vadd.f32 %v1156, %v1216
    %v1241 = vadd.f32 %v1157, %v1236
    %v1242 = vxor.u32 %v1238, 2147483648
    %v1243 = vmul.f32 %v1242, 1.442695
    %v1244 = vpow.pop %v1243
    %v1245 = vadd.f32 %v1244, 1.0
    %v1246 = vrcp.pop %v1245
    %v1247 = vmul.f32 %v1245, %v1246
    %v1248 = vsub.f32 1.0, %v1247
    %v1249 = vmul.f32 %v1246, %v1248
    %v1250 = vadd.f32 %v1246, %v1249
    %vm1251 = vweird.f32 %v1245
    %vm1252 = vweird.f32 %v1246
    %vm1253 = vmor %vm1251, %vm1252
    %v1254 = vsel %vm1253, %v1246, %v1250
    %v1255 = vand.u32 2147483647, %v1245
    %vm1256 = vcmp.eq.f32.partialorder %v1255, 8.507059e+37
    %v1257 = vand.u32 %v1245, 2147483648
    %v1258 = vor.u32 1.1754944e-38, %v1257
    %v1259 = vsel %vm1256, %v1258, %v1254
    %v1260 = vmul.f32 1.0, %v1259
    %v1261 = vxor.u32 %v1239, 2147483648
    %v1262 = vmul.f32 %v1261, 1.442695
    %v1263 = vpow.pop %v1262
    %v1264 = vadd.f32 %v1263, 1.0
    %v1265 = vrcp.pop %v1264
    %v1266 = vmul.f32 %v1264, %v1265
    %v1267 = vsub.f32 1.0, %v1266
    %v1268 = vmul.f32 %v1265, %v1267
    %v1269 = vadd.f32 %v1265, %v1268
    %vm1270 = vweird.f32 %v1264
    %vm1271 = vweird.f32 %v1265
    %vm1272 = vmor %vm1270, %vm1271
    %v1273 = vsel %vm1272, %v1265, %v1269
    %v1274 = vand.u32 2147483647, %v1264
    %vm1275 = vcmp.eq.f32.partialorder %v1274, 8.507059e+37
    %v1276 = vand.u32 %v1264, 2147483648
    %v1277 = vor.u32 1.1754944e-38, %v1276
    %v1278 = vsel %vm1275, %v1277, %v1273
    %v1279 = vmul.f32 1.0, %v1278
    %v1280 = vtanh.pop %v1240
    %v1281 = vxor.u32 %v1241, 2147483648
    %v1282 = vmul.f32 %v1281, 1.442695
    %v1283 = vpow.pop %v1282
    %v1284 = vadd.f32 %v1283, 1.0
    %v1285 = vrcp.pop %v1284
    %v1286 = vmul.f32 %v1284, %v1285
    %v1287 = vsub.f32 1.0, %v1286
    %v1288 = vmul.f32 %v1285, %v1287
    %v1289 = vadd.f32 %v1285, %v1288
    %vm1290 = vweird.f32 %v1284
    %vm1291 = vweird.f32 %v1285
    %vm1292 = vmor %vm1290, %vm1291
    %v1293 = vsel %vm1292, %v1285, %v1289
    %v1294 = vand.u32 2147483647, %v1284
    %vm1295 = vcmp.eq.f32.partialorder %v1294, 8.507059e+37
    %v1296 = vand.u32 %v1284, 2147483648
    %v1297 = vor.u32 1.1754944e-38, %v1296
    %v1298 = vsel %vm1295, %v1297, %v1293
    %v1299 = vmul.f32 1.0, %v1298
    %v1300 = vmul.f32 %v1279, %v1151
    %v1301 = vmul.f32 %v1260, %v1280
    %v1302 = vadd.f32 %v1300, %v1301
    %v1303 = vtanh.pop %v1302
    %v1304 = vmul.f32 %v1299, %v1303
    %v1305 = vld [vmem:[#allocation2 + $0xc0] sm:$0xff]
    %v1306 = vld [vmem:[#allocation2 + $0xc8] sm:$0xff]
    %v1307 = vld [vmem:[#allocation2 + $0xd0] sm:$0xff]
    %v1308 = vld [vmem:[#allocation2 + $0xd8] sm:$0xff]
    %1309 = vmatpush.msra.mxu0 %v399
    %1310 = vmatpush.msra.mxu0 %v395
    %1311 = vmatpush.msra.mxu0 %v391
    %1312 = vmatpush.msra.mxu0 %v387
    %1313 = vmatpush.msra.mxu0 %v383
    %1314 = vmatpush.msra.mxu0 %v379
    %1315 = vmatpush.msra.mxu0 %v375
    %1316 = vmatpush.msra.mxu0 %v371
    %1317 = vmatpush.msra.mxu0 %v367
    %1318 = vmatpush.msra.mxu0 %v363
    %1319 = vmatpush.msra.mxu0 %v359
    %1320 = vmatpush.msra.mxu0 %v355
    %1321 = vmatpush.msra.mxu0 %v351
    %1322 = vmatpush.msra.mxu0 %v347
    %1323 = vmatpush.msra.mxu0 %v343
    %1324 = vmatpush.msra.mxu0 %v339
    %1325 = vmatmul.f32.gmra.mxu0 %v1304
    %v1326 = vpop.f32.mrf.mxu0
    %v1327 = vadd.f32 0.0, %v1326
    %1328 = vdwg.mxu0
    %1329 = vmatpush.msra.mxu0 %v400
    %1330 = vmatpush.msra.mxu0 %v396
    %1331 = vmatpush.msra.mxu0 %v392
    %1332 = vmatpush.msra.mxu0 %v388
    %1333 = vmatpush.msra.mxu0 %v384
    %1334 = vmatpush.msra.mxu0 %v380
    %1335 = vmatpush.msra.mxu0 %v376
    %1336 = vmatpush.msra.mxu0 %v372
    %1337 = vmatpush.msra.mxu0 %v368
    %1338 = vmatpush.msra.mxu0 %v364
    %1339 = vmatpush.msra.mxu0 %v360
    %1340 = vmatpush.msra.mxu0 %v356
    %1341 = vmatpush.msra.mxu0 %v352
    %1342 = vmatpush.msra.mxu0 %v348
    %1343 = vmatpush.msra.mxu0 %v344
    %1344 = vmatpush.msra.mxu0 %v340
    %1345 = vmatmul.f32.gmra.mxu0 %v1304
    %v1346 = vpop.f32.mrf.mxu0
    %v1347 = vadd.f32 0.0, %v1346
    %1348 = vdwg.mxu0
    %1349 = vmatpush.msra.mxu0 %v401
    %1350 = vmatpush.msra.mxu0 %v397
    %1351 = vmatpush.msra.mxu0 %v393
    %1352 = vmatpush.msra.mxu0 %v389
    %1353 = vmatpush.msra.mxu0 %v385
    %1354 = vmatpush.msra.mxu0 %v381
    %1355 = vmatpush.msra.mxu0 %v377
    %1356 = vmatpush.msra.mxu0 %v373
    %1357 = vmatpush.msra.mxu0 %v369
    %1358 = vmatpush.msra.mxu0 %v365
    %1359 = vmatpush.msra.mxu0 %v361
    %1360 = vmatpush.msra.mxu0 %v357
    %1361 = vmatpush.msra.mxu0 %v353
    %1362 = vmatpush.msra.mxu0 %v349
    %1363 = vmatpush.msra.mxu0 %v345
    %1364 = vmatpush.msra.mxu0 %v341
    %1365 = vmatmul.f32.gmra.mxu0 %v1304
    %v1366 = vpop.f32.mrf.mxu0
    %v1367 = vadd.f32 0.0, %v1366
    %1368 = vdwg.mxu0
    %1369 = vmatpush.msra.mxu0 %v402
    %1370 = vmatpush.msra.mxu0 %v398
    %1371 = vmatpush.msra.mxu0 %v394
    %1372 = vmatpush.msra.mxu0 %v390
    %1373 = vmatpush.msra.mxu0 %v386
    %1374 = vmatpush.msra.mxu0 %v382
    %1375 = vmatpush.msra.mxu0 %v378
    %1376 = vmatpush.msra.mxu0 %v374
    %1377 = vmatpush.msra.mxu0 %v370
    %1378 = vmatpush.msra.mxu0 %v366
    %1379 = vmatpush.msra.mxu0 %v362
    %1380 = vmatpush.msra.mxu0 %v358
    %1381 = vmatpush.msra.mxu0 %v354
    %1382 = vmatpush.msra.mxu0 %v350
    %1383 = vmatpush.msra.mxu0 %v346
    %1384 = vmatpush.msra.mxu0 %v342
    %1385 = vmatmul.f32.gmra.mxu0 %v1304
    %v1386 = vpop.f32.mrf.mxu0
    %v1387 = vadd.f32 0.0, %v1386
    %1388 = vdwg.mxu0
    %v1389 = vadd.f32 %v1305, %v1327
    %v1390 = vadd.f32 %v1306, %v1347
    %v1391 = vadd.f32 %v1307, %v1367
    %v1392 = vadd.f32 %v1308, %v1387
    %v1393 = vxor.u32 %v1389, 2147483648
    %v1394 = vmul.f32 %v1393, 1.442695
    %v1395 = vpow.pop %v1394
    %v1396 = vadd.f32 %v1395, 1.0
    %v1397 = vrcp.pop %v1396
    %v1398 = vmul.f32 %v1396, %v1397
    %v1399 = vsub.f32 1.0, %v1398
    %v1400 = vmul.f32 %v1397, %v1399
    %v1401 = vadd.f32 %v1397, %v1400
    %vm1402 = vweird.f32 %v1396
    %vm1403 = vweird.f32 %v1397
    %vm1404 = vmor %vm1402, %vm1403
    %v1405 = vsel %vm1404, %v1397, %v1401
    %v1406 = vand.u32 2147483647, %v1396
    %vm1407 = vcmp.eq.f32.partialorder %v1406, 8.507059e+37
    %v1408 = vand.u32 %v1396, 2147483648
    %v1409 = vor.u32 1.1754944e-38, %v1408
    %v1410 = vsel %vm1407, %v1409, %v1405
    %v1411 = vmul.f32 1.0, %v1410
    %v1412 = vxor.u32 %v1390, 2147483648
    %v1413 = vmul.f32 %v1412, 1.442695
    %v1414 = vpow.pop %v1413
    %v1415 = vadd.f32 %v1414, 1.0
    %v1416 = vrcp.pop %v1415
    %v1417 = vmul.f32 %v1415, %v1416
    %v1418 = vsub.f32 1.0, %v1417
    %v1419 = vmul.f32 %v1416, %v1418
    %v1420 = vadd.f32 %v1416, %v1419
    %vm1421 = vweird.f32 %v1415
    %vm1422 = vweird.f32 %v1416
    %vm1423 = vmor %vm1421, %vm1422
    %v1424 = vsel %vm1423, %v1416, %v1420
    %v1425 = vand.u32 2147483647, %v1415
    %vm1426 = vcmp.eq.f32.partialorder %v1425, 8.507059e+37
    %v1427 = vand.u32 %v1415, 2147483648
    %v1428 = vor.u32 1.1754944e-38, %v1427
    %v1429 = vsel %vm1426, %v1428, %v1424
    %v1430 = vmul.f32 1.0, %v1429
    %v1431 = vtanh.pop %v1391
    %v1432 = vxor.u32 %v1392, 2147483648
    %v1433 = vmul.f32 %v1432, 1.442695
    %v1434 = vpow.pop %v1433
    %v1435 = vadd.f32 %v1434, 1.0
    %v1436 = vrcp.pop %v1435
    %v1437 = vmul.f32 %v1435, %v1436
    %v1438 = vsub.f32 1.0, %v1437
    %v1439 = vmul.f32 %v1436, %v1438
    %v1440 = vadd.f32 %v1436, %v1439
    %vm1441 = vweird.f32 %v1435
    %vm1442 = vweird.f32 %v1436
    %vm1443 = vmor %vm1441, %vm1442
    %v1444 = vsel %vm1443, %v1436, %v1440
    %v1445 = vand.u32 2147483647, %v1435
    %vm1446 = vcmp.eq.f32.partialorder %v1445, 8.507059e+37
    %v1447 = vand.u32 %v1435, 2147483648
    %v1448 = vor.u32 1.1754944e-38, %v1447
    %v1449 = vsel %vm1446, %v1448, %v1444
    %v1450 = vmul.f32 1.0, %v1449
    %v1451 = vmul.f32 %v1430, %v1302
    %v1452 = vmul.f32 %v1411, %v1431
    %v1453 = vadd.f32 %v1451, %v1452
    %v1454 = vtanh.pop %v1453
    %v1455 = vmul.f32 %v1450, %v1454
    %v1456 = vld [vmem:[#allocation2 + $0xe0] sm:$0xff]
    %v1457 = vld [vmem:[#allocation2 + $0xe8] sm:$0xff]
    %v1458 = vld [vmem:[#allocation2 + $0xf0] sm:$0xff]
    %v1459 = vld [vmem:[#allocation2 + $0xf8] sm:$0xff]
    %1460 = vmatpush.msra.mxu0 %v399
    %1461 = vmatpush.msra.mxu0 %v395
    %1462 = vmatpush.msra.mxu0 %v391
    %1463 = vmatpush.msra.mxu0 %v387
    %1464 = vmatpush.msra.mxu0 %v383
    %1465 = vmatpush.msra.mxu0 %v379
    %1466 = vmatpush.msra.mxu0 %v375
    %1467 = vmatpush.msra.mxu0 %v371
    %1468 = vmatpush.msra.mxu0 %v367
    %1469 = vmatpush.msra.mxu0 %v363
    %1470 = vmatpush.msra.mxu0 %v359
    %1471 = vmatpush.msra.mxu0 %v355
    %1472 = vmatpush.msra.mxu0 %v351
    %1473 = vmatpush.msra.mxu0 %v347
    %1474 = vmatpush.msra.mxu0 %v343
    %1475 = vmatpush.msra.mxu0 %v339
    %1476 = vmatmul.f32.gmra.mxu0 %v1455
    %v1477 = vpop.f32.mrf.mxu0
    %v1478 = vadd.f32 0.0, %v1477
    %1479 = vdwg.mxu0
    %1480 = vmatpush.msra.mxu0 %v400
    %1481 = vmatpush.msra.mxu0 %v396
    %1482 = vmatpush.msra.mxu0 %v392
    %1483 = vmatpush.msra.mxu0 %v388
    %1484 = vmatpush.msra.mxu0 %v384
    %1485 = vmatpush.msra.mxu0 %v380
    %1486 = vmatpush.msra.mxu0 %v376
    %1487 = vmatpush.msra.mxu0 %v372
    %1488 = vmatpush.msra.mxu0 %v368
    %1489 = vmatpush.msra.mxu0 %v364
    %1490 = vmatpush.msra.mxu0 %v360
    %1491 = vmatpush.msra.mxu0 %v356
    %1492 = vmatpush.msra.mxu0 %v352
    %1493 = vmatpush.msra.mxu0 %v348
    %1494 = vmatpush.msra.mxu0 %v344
    %1495 = vmatpush.msra.mxu0 %v340
    %1496 = vmatmul.f32.gmra.mxu0 %v1455
    %v1497 = vpop.f32.mrf.mxu0
    %v1498 = vadd.f32 0.0, %v1497
    %1499 = vdwg.mxu0
    %1500 = vmatpush.msra.mxu0 %v401
    %1501 = vmatpush.msra.mxu0 %v397
    %1502 = vmatpush.msra.mxu0 %v393
    %1503 = vmatpush.msra.mxu0 %v389
    %1504 = vmatpush.msra.mxu0 %v385
    %1505 = vmatpush.msra.mxu0 %v381
    %1506 = vmatpush.msra.mxu0 %v377
    %1507 = vmatpush.msra.mxu0 %v373
    %1508 = vmatpush.msra.mxu0 %v369
    %1509 = vmatpush.msra.mxu0 %v365
    %1510 = vmatpush.msra.mxu0 %v361
    %1511 = vmatpush.msra.mxu0 %v357
    %1512 = vmatpush.msra.mxu0 %v353
    %1513 = vmatpush.msra.mxu0 %v349
    %1514 = vmatpush.msra.mxu0 %v345
    %1515 = vmatpush.msra.mxu0 %v341
    %1516 = vmatmul.f32.gmra.mxu0 %v1455
    %v1517 = vpop.f32.mrf.mxu0
    %v1518 = vadd.f32 0.0, %v1517
    %1519 = vdwg.mxu0
    %1520 = vmatpush.msra.mxu0 %v402
    %1521 = vmatpush.msra.mxu0 %v398
    %1522 = vmatpush.msra.mxu0 %v394
    %1523 = vmatpush.msra.mxu0 %v390
    %1524 = vmatpush.msra.mxu0 %v386
    %1525 = vmatpush.msra.mxu0 %v382
    %1526 = vmatpush.msra.mxu0 %v378
    %1527 = vmatpush.msra.mxu0 %v374
    %1528 = vmatpush.msra.mxu0 %v370
    %1529 = vmatpush.msra.mxu0 %v366
    %1530 = vmatpush.msra.mxu0 %v362
    %1531 = vmatpush.msra.mxu0 %v358
    %1532 = vmatpush.msra.mxu0 %v354
    %1533 = vmatpush.msra.mxu0 %v350
    %1534 = vmatpush.msra.mxu0 %v346
    %1535 = vmatpush.msra.mxu0 %v342
    %1536 = vmatmul.f32.gmra.mxu0 %v1455
    %v1537 = vpop.f32.mrf.mxu0
    %v1538 = vadd.f32 0.0, %v1537
    %1539 = vdwg.mxu0
    %v1540 = vadd.f32 %v1456, %v1478
    %v1541 = vadd.f32 %v1457, %v1498
    %v1542 = vadd.f32 %v1458, %v1518
    %v1543 = vadd.f32 %v1459, %v1538
    %v1544 = vxor.u32 %v1540, 2147483648
    %v1545 = vmul.f32 %v1544, 1.442695
    %v1546 = vpow.pop %v1545
    %v1547 = vadd.f32 %v1546, 1.0
    %v1548 = vrcp.pop %v1547
    %v1549 = vmul.f32 %v1547, %v1548
    %v1550 = vsub.f32 1.0, %v1549
    %v1551 = vmul.f32 %v1548, %v1550
    %v1552 = vadd.f32 %v1548, %v1551
    %vm1553 = vweird.f32 %v1547
    %vm1554 = vweird.f32 %v1548
    %vm1555 = vmor %vm1553, %vm1554
    %v1556 = vsel %vm1555, %v1548, %v1552
    %v1557 = vand.u32 2147483647, %v1547
    %vm1558 = vcmp.eq.f32.partialorder %v1557, 8.507059e+37
    %v1559 = vand.u32 %v1547, 2147483648
    %v1560 = vor.u32 1.1754944e-38, %v1559
    %v1561 = vsel %vm1558, %v1560, %v1556
    %v1562 = vmul.f32 1.0, %v1561
    %v1563 = vxor.u32 %v1541, 2147483648
    %v1564 = vmul.f32 %v1563, 1.442695
    %v1565 = vpow.pop %v1564
    %v1566 = vadd.f32 %v1565, 1.0
    %v1567 = vrcp.pop %v1566
    %v1568 = vmul.f32 %v1566, %v1567
    %v1569 = vsub.f32 1.0, %v1568
    %v1570 = vmul.f32 %v1567, %v1569
    %v1571 = vadd.f32 %v1567, %v1570
    %vm1572 = vweird.f32 %v1566
    %vm1573 = vweird.f32 %v1567
    %vm1574 = vmor %vm1572, %vm1573
    %v1575 = vsel %vm1574, %v1567, %v1571
    %v1576 = vand.u32 2147483647, %v1566
    %vm1577 = vcmp.eq.f32.partialorder %v1576, 8.507059e+37
    %v1578 = vand.u32 %v1566, 2147483648
    %v1579 = vor.u32 1.1754944e-38, %v1578
    %v1580 = vsel %vm1577, %v1579, %v1575
    %v1581 = vmul.f32 1.0, %v1580
    %v1582 = vtanh.pop %v1542
    %v1583 = vxor.u32 %v1543, 2147483648
    %v1584 = vmul.f32 %v1583, 1.442695
    %v1585 = vpow.pop %v1584
    %v1586 = vadd.f32 %v1585, 1.0
    %v1587 = vrcp.pop %v1586
    %v1588 = vmul.f32 %v1586, %v1587
    %v1589 = vsub.f32 1.0, %v1588
    %v1590 = vmul.f32 %v1587, %v1589
    %v1591 = vadd.f32 %v1587, %v1590
    %vm1592 = vweird.f32 %v1586
    %vm1593 = vweird.f32 %v1587
    %vm1594 = vmor %vm1592, %vm1593
    %v1595 = vsel %vm1594, %v1587, %v1591
    %v1596 = vand.u32 2147483647, %v1586
    %vm1597 = vcmp.eq.f32.partialorder %v1596, 8.507059e+37
    %v1598 = vand.u32 %v1586, 2147483648
    %v1599 = vor.u32 1.1754944e-38, %v1598
    %v1600 = vsel %vm1597, %v1599, %v1595
    %v1601 = vmul.f32 1.0, %v1600
    %v1602 = vmul.f32 %v1581, %v1453
    %v1603 = vmul.f32 %v1562, %v1582
    %v1604 = vadd.f32 %v1602, %v1603
    %v1605 = vtanh.pop %v1604
    %v1606 = vmul.f32 %v1601, %v1605
    %v1607 = vld [vmem:[%s4] sm:$0xff]
    %v1608 = vld [vmem:[%s4 + $0x8] sm:$0xff]
    %v1609 = vld [vmem:[%s4 + $0x10] sm:$0xff]
    %v1610 = vld [vmem:[%s4 + $0x18] sm:$0xff]
    %v1611 = vld [vmem:[%s4 + $0x20] sm:$0xff]
    %v1612 = vld [vmem:[%s4 + $0x28] sm:$0xff]
    %v1613 = vld [vmem:[%s4 + $0x30] sm:$0xff]
    %v1614 = vld [vmem:[%s4 + $0x38] sm:$0xff]
    %v1615 = vld [vmem:[%s4 + $0x40] sm:$0xff]
    %v1616 = vld [vmem:[%s4 + $0x48] sm:$0xff]
    %v1617 = vld [vmem:[%s4 + $0x50] sm:$0xff]
    %v1618 = vld [vmem:[%s4 + $0x58] sm:$0xff]
    %v1619 = vld [vmem:[%s4 + $0x60] sm:$0xff]
    %v1620 = vld [vmem:[%s4 + $0x68] sm:$0xff]
    %v1621 = vld [vmem:[%s4 + $0x70] sm:$0xff]
    %v1622 = vld [vmem:[%s4 + $0x78] sm:$0xff]
    %v1623 = vld [vmem:[#allocation3] sm:$0x1]
    %v1625 = vperm.slane %v1623, 0
    %1627 = vmatpush.msra.mxu0 %v1622
    %1628 = vmatpush.msra.mxu0 %v1621
    %1629 = vmatpush.msra.mxu0 %v1620
    %1630 = vmatpush.msra.mxu0 %v1619
    %1631 = vmatpush.msra.mxu0 %v1618
    %1632 = vmatpush.msra.mxu0 %v1617
    %1633 = vmatpush.msra.mxu0 %v1616
    %1634 = vmatpush.msra.mxu0 %v1615
    %1635 = vmatpush.msra.mxu0 %v1614
    %1636 = vmatpush.msra.mxu0 %v1613
    %1637 = vmatpush.msra.mxu0 %v1612
    %1638 = vmatpush.msra.mxu0 %v1611
    %1639 = vmatpush.msra.mxu0 %v1610
    %1640 = vmatpush.msra.mxu0 %v1609
    %1641 = vmatpush.msra.mxu0 %v1608
    %1642 = vmatpush.msra.mxu0 %v1607
    %1643 = vmatmul.f32.gmra.mxu0 %v1606
    %v1644 = vpop.f32.mrf.mxu0
    %v1645 = vadd.f32 %v1625, %v1644
    %1646 = vdwg.mxu0
    %vm1647 = vcmask 7168
    %1648 = vst.msk [vmem:[%s6] sm:$0xff] %vm1647, %v1645
    // Predicated region
    $region34: #{tpu_custom_call.1} parent=1 // pred_check
      _
    $region35: #{tpu_custom_call.1} parent=1 // pred_check_branch
      %1650 = sbr.rel (0) target = $region37
    $region36: #{tpu_custom_call.1} parent=1 // pred_region
      _
    $region37: #{tpu_custom_call.1} parent=1 // pred_fallthru
      _
    // Predicated region
    $region38: #{tpu_custom_call.1} parent=1 // pred_check
      _
    $region39: #{tpu_custom_call.1} parent=1 // pred_check_branch
      %1652 = sbr.rel (0) target = $region41
    $region40: #{tpu_custom_call.1} parent=1 // pred_region
      _
    $region41: #{tpu_custom_call.1} parent=1 // pred_fallthru
      _
    %1653 = vsyncpa [#allocation5], 1
    %1654 = vsyncpa [#allocation7], 1

</llo_original>
